<compile_context>
chip_gen: v6e
topology: v6e:2x2x1
jax: 0.10.0
libtpu: 0.0.40
codegen_flags: <defaults>
</compile_context>

<pallas_src>
import functools

import jax
import jax.numpy as jnp
from jax.experimental import pallas as pl
from jax.experimental.pallas import tpu as pltpu


def _round_up(n, m):
    return ((n + m - 1) // m) * m


def _pick_batch_tile(B, T, G, vmem_budget_bytes=8 * 1024 * 1024):
    """Choose the batch tile (sublane rows per grid step)."""
    # Target up to 256 MXU rows per tile (full row utilization on v6e/v7x,
    # two row passes on v5e), but never more than the padded batch itself.
    bt = min(_round_up(B, 8), 256)
    # Cap so the hoisted-projection scratch (T, BT, G) f32 stays within a
    # conservative VMEM budget (leaves headroom on v7x's 64 MiB VMEM).
    cap = max(8, (vmem_budget_bytes // (T * G * 4)) // 8 * 8)
    bt = min(bt, cap)
    # If the whole batch fits in a single tile but spans more than one sublane
    # group, split it in two so the ("parallel",) axis feeds both v7x TCs.
    if bt >= B and B > 8:
        bt = _round_up((B + 1) // 2, 8)
    return max(bt, 8)


# -----------------------------------------------------------------------------
# Kernel: single-layer LSTM recurrence on one batch tile + final linear on the
# last hidden state.  Gates are packed along lanes with stride GS
# (GS == H when all four gates share one 128-lane block).
# -----------------------------------------------------------------------------
def lstm_predictor_kernel(x_ref, wih_ref, whh_ref, b_ref, wlin_ref, blin_ref,
                          y_ref, gx_ref, *, hidden_dim, input_dim,
                          gate_stride):
    # x_ref:    (BT, T*Din)   lane-dense batch-first input tile
    # wih_ref:  (Din, G)      packed weight_ih_l0.T
    # whh_ref:  (H,   G)      packed weight_hh_l0.T
    # b_ref:    (1,   G)      packed bias_ih + bias_hh
    # wlin_ref: (H, OUTP)     packed linear.weight.T
    # blin_ref: (1, OUTP)     packed linear.bias
    # y_ref:    (BT, OUTP)    lane-dense output (column 0 is the prediction)
    # gx_ref:   (T, BT, G)    VMEM scratch: hoisted input-side gate projection
    H, Din, GS = hidden_dim, input_dim, gate_stride
    BT = x_ref.shape[0]
    T = gx_ref.shape[0]
    G = whh_ref.shape[1]

    wih = wih_ref[...]
    whh = whh_ref[...]
    b = b_ref[...]

    # ---- hoisted input projection: gx[t, b, :] = x[b, t, :] @ W_ih + bias ---
    if Din == 1:
        # K=1 matmul is pure MXU waste -> VPU broadcast multiply instead.
        x_tm = x_ref[...].T                                 # (T, BT)
        gx_ref[...] = (x_tm[:, :, None] * wih.reshape(1, 1, G)
                       + b.reshape(1, 1, G))
    else:
        # TODO(synk): general Din>1 fallback (module spec uses input_dim == 1);
        # the relayout below is prologue-only but untuned.
        x3 = x_ref[...].reshape(BT, T, Din)
        xf = jnp.transpose(x3, (1, 0, 2)).reshape(T * BT, Din)
        gx_ref[...] = (jnp.dot(xf, wih, preferred_element_type=jnp.float32)
                       + b).reshape(T, BT, G)

    # ---- serial recurrence: one (BT,H)x(H,G) matmul + elementwise per step --
    h0 = jnp.zeros((BT, H), jnp.float32)
    c0 = jnp.zeros((BT, H), jnp.float32)

    def step(t, carry):
        h, c = carry
        gates = gx_ref[t] + jnp.dot(h, whh,
                                    preferred_element_type=jnp.float32)
        # Two whole-slab transcendentals (EUP), then static lane slices.
        sg = jax.nn.sigmoid(gates)              # i | f | . | o lanes
        th = jnp.tanh(gates)                    # . | . | g | . lanes
        i = sg[:, 0 * GS:0 * GS + H]
        f = sg[:, 1 * GS:1 * GS + H]
        g = th[:, 2 * GS:2 * GS + H]
        o = sg[:, 3 * GS:3 * GS + H]
        c_new = f * c + i * g
        h_new = o * jnp.tanh(c_new)
        return h_new, c_new

    unroll = T if T <= 32 else 8   # T is static; full unroll for small seqs
    h_last, _ = jax.lax.fori_loop(0, T, step, (h0, c0), unroll=unroll)

    # ---- final linear on the last hidden state (lane-dense output slab) -----
    y_ref[...] = (jnp.dot(h_last, wlin_ref[...],
                          preferred_element_type=jnp.float32)
                  + blin_ref[...])


# -----------------------------------------------------------------------------
# Wrapper
# -----------------------------------------------------------------------------
def time_series_predictor(x, params):
    """x: (B, T, Din) float32 (batch_first, like PyTorch).

    Returns shape (B,) for B > 1, scalar for B == 1 (matches .squeeze()).
    """
    B, T, Din = x.shape
    H = params["hidden_dim"]
    GS = params["gate_stride"]
    G = params["whh_p"].shape[1]
    OUTP = params["wlin_p"].shape[1]

    BT = _pick_batch_tile(B, T, G)
    Bpad = _round_up(B, BT)
    nb = Bpad // BT

    # Drop the (possibly size-1) feature lane in the wrapper -> lane-dense tile
    xw = x.reshape(B, T * Din)
    if Bpad != B:
        xw = jnp.pad(xw, ((0, Bpad - B), (0, 0)))

    grid_spec = pltpu.PrefetchScalarGridSpec(
        num_scalar_prefetch=0,
        grid=(nb,),
        in_specs=[
            pl.BlockSpec((BT, T * Din), lambda i: (i, 0)),           # x tile
            # Grid-invariant weight/bias blocks (~20 KiB total at H=20; for
            # large H, add pipeline_mode=pl.Buffered(1) to single-buffer).
            pl.BlockSpec(params["wih_p"].shape, lambda i: (0, 0)),
            pl.BlockSpec(params["whh_p"].shape, lambda i: (0, 0)),
            pl.BlockSpec(params["b_p"].shape, lambda i: (0, 0)),
            pl.BlockSpec(params["wlin_p"].shape, lambda i: (0, 0)),
            pl.BlockSpec(params["blin_p"].shape, lambda i: (0, 0)),
        ],
        out_specs=pl.BlockSpec((BT, OUTP), lambda i: (i, 0)),
        scratch_shapes=[pltpu.VMEM((T, BT, G), jnp.float32)],
    )

    kernel = functools.partial(lstm_predictor_kernel, hidden_dim=H,
                               input_dim=Din, gate_stride=GS)

    out = pl.pallas_call(
        kernel,
        out_shape=jax.ShapeDtypeStruct((Bpad, OUTP), jnp.float32),
        grid_spec=grid_spec,
        compiler_params=pltpu.CompilerParams(
            dimension_semantics=("parallel",),      # batch shards across TCs
            vmem_limit_bytes=32 * 1024 * 1024),
    )(xw, params["wih_p"], params["whh_p"], params["b_p"],
      params["wlin_p"], params["blin_p"])

    # column 0 holds the real output; keep PyTorch .squeeze() semantics
    return jnp.squeeze(out[:B, 0:1])


# -----------------------------------------------------------------------------
# Parameter construction + lane-aligned packing
# -----------------------------------------------------------------------------
def pack_params(w_ih, w_hh, b_ih, b_hh, w_lin, b_lin, hidden_dim):
    """Pack gates along lanes.

    If 4*H <= 128 all four gates share one 128-lane block (gate stride = H);
    otherwise each gate gets its own 128-aligned block (stride = ceil128(H)).
    """
    H = hidden_dim
    Din = w_ih.shape[1]
    out_dim = w_lin.shape[0]
    OUTP = _round_up(out_dim, 128)
    GS = H if 4 * H <= 128 else _round_up(H, 128)   # gate stride (lanes)
    G = max(4 * GS, 128)                            # packed gate-lane width

    wih_t = w_ih.T                    # (Din, 4H)
    whh_t = w_hh.T                    # (H, 4H)
    bias = b_ih + b_hh                # (4H,)

    wih_p = jnp.zeros((Din, G), jnp.float32)
    whh_p = jnp.zeros((H, G), jnp.float32)
    b_p = jnp.zeros((1, G), jnp.float32)
    for g in range(4):                # PyTorch gate order: i, f, g, o
        wih_p = wih_p.at[:, g * GS:g * GS + H].set(wih_t[:, g * H:(g + 1) * H])
        whh_p = whh_p.at[:, g * GS:g * GS + H].set(whh_t[:, g * H:(g + 1) * H])
        b_p = b_p.at[0, g * GS:g * GS + H].set(bias[g * H:(g + 1) * H])

    wlin_p = jnp.zeros((H, OUTP), jnp.float32).at[:, :out_dim].set(w_lin.T)
    blin_p = jnp.zeros((1, OUTP), jnp.float32).at[0, :out_dim].set(b_lin)
    return {"wih_p": wih_p, "whh_p": whh_p, "b_p": b_p,
            "wlin_p": wlin_p, "blin_p": blin_p, "gate_stride": GS}


def init_params(key, input_dim, hidden_dim, output_dim=1):
    k = 1.0 / jnp.sqrt(hidden_dim)
    keys = jax.random.split(key, 6)
    # PyTorch shapes: weight_ih (4H, Din), weight_hh (4H, H), biases (4H,)
    w_ih = jax.random.uniform(keys[0], (4 * hidden_dim, input_dim),
                              jnp.float32, -k, k)
    w_hh = jax.random.uniform(keys[1], (4 * hidden_dim, hidden_dim),
                              jnp.float32, -k, k)
    b_ih = jax.random.uniform(keys[2], (4 * hidden_dim,), jnp.float32, -k, k)
    b_hh = jax.random.uniform(keys[3], (4 * hidden_dim,), jnp.float32, -k, k)
    w_lin = jax.random.uniform(keys[4], (output_dim, hidden_dim),
                               jnp.float32, -k, k)
    b_lin = jax.random.uniform(keys[5], (output_dim,), jnp.float32, -k, k)

    params = {
        "hidden_dim": hidden_dim,
        # raw (PyTorch-layout) forms for the pure-JAX reference
        "wih_t": jnp.transpose(w_ih),                        # (Din, 4H)
        "whh_t": jnp.transpose(w_hh),                        # (H, 4H)
        "b": (b_ih + b_hh)[None, :],                         # (1, 4H)
        "wlin_t": jnp.transpose(w_lin),                      # (H, out)
        "blin": b_lin[None, :],                              # (1, out)
    }
    params.update(pack_params(w_ih, w_hh, b_ih, b_hh, w_lin, b_lin,
                              hidden_dim))
    return params


# -----------------------------------------------------------------------------
# Pure-JAX reference (PyTorch LSTM semantics) using UNPACKED weights
# -----------------------------------------------------------------------------
def reference_predictor(x, params):
    B, T, Din = x.shape
    H = params["whh_t"].shape[0]

    def step(carry, x_t):
        h, c = carry
        gates = x_t @ params["wih_t"] + h @ params["whh_t"] + params["b"]
        i = jax.nn.sigmoid(gates[:, 0:H])
        f = jax.nn.sigmoid(gates[:, H:2 * H])
        g = jnp.tanh(gates[:, 2 * H:3 * H])
        o = jax.nn.sigmoid(gates[:, 3 * H:4 * H])
        c_new = f * c + i * g
        h_new = o * jnp.tanh(c_new)
        return (h_new, c_new), None

    (h_last, _), _ = jax.lax.scan(
        step, (jnp.zeros((B, H)), jnp.zeros((B, H))),
        jnp.transpose(x, (1, 0, 2)))
    return jnp.squeeze(h_last @ params["wlin_t"] + params["blin"])


if __name__ == "__main__":
    input_dim = 1
    hidden_dim = 20
    output_dim = 1
    batch = 2
    seq = 8

    key = jax.random.PRNGKey(0)
    kx, kp = jax.random.split(key)
    params = init_params(kp, input_dim, hidden_dim, output_dim)

    # config 1: tiny batch (single grid step)
    x = jax.random.normal(kx, (batch, seq, input_dim), jnp.float32)
    y = jax.block_until_ready(time_series_predictor(x, params))
    y_ref = reference_predictor(x, params)
    assert y.shape == (batch,), y.shape
    assert jnp.allclose(y, y_ref, atol=2e-5, rtol=2e-5), (y, y_ref)

    # config 2: larger batch -> padded batch rows + 2 "parallel" grid steps
    x2 = jax.random.normal(jax.random.PRNGKey(1), (20, seq, input_dim),
                           jnp.float32)
    y2 = jax.block_until_ready(time_series_predictor(x2, params))
    y2_ref = reference_predictor(x2, params)
    assert y2.shape == (20,), y2.shape
    assert jnp.allclose(y2, y2_ref, atol=2e-5, rtol=2e-5), (y2, y2_ref)

    print("KERNEL_OK")
</pallas_src>

<mosaic_0001>
module attributes {stable_mosaic.version = 11 : i64} {
  func.func @lstm_predictor_kernel(%arg0: i32, %arg1: memref<8x8xf32, #tpu.memory_space<vmem>>, %arg2: memref<1x128xf32, #tpu.memory_space<vmem>>, %arg3: memref<20x128xf32, #tpu.memory_space<vmem>>, %arg4: memref<1x128xf32, #tpu.memory_space<vmem>>, %arg5: memref<20x128xf32, #tpu.memory_space<vmem>>, %arg6: memref<1x128xf32, #tpu.memory_space<vmem>>, %arg7: memref<8x128xf32, #tpu.memory_space<vmem>>, %arg8: memref<8x8x128xf32, #tpu.memory_space<vmem>>) attributes {dimension_semantics = [#tpu.dimension_semantics<parallel>], iteration_bounds = array<i64: 1>, scalar_prefetch = 0 : i64, scratch_operands = 1 : i64, tpu.core_type = #tpu.core_type<tc>, window_params = [{transform_indices = @transform_0, window_bounds = array<i64: 8, 8>}, {pipeline_mode = #tpu.pipeline_mode<synchronous>, transform_indices = @transform_1, window_bounds = array<i64: 1, 128>}, {pipeline_mode = #tpu.pipeline_mode<synchronous>, transform_indices = @transform_2, window_bounds = array<i64: 20, 128>}, {pipeline_mode = #tpu.pipeline_mode<synchronous>, transform_indices = @transform_3, window_bounds = array<i64: 1, 128>}, {pipeline_mode = #tpu.pipeline_mode<synchronous>, transform_indices = @transform_4, window_bounds = array<i64: 20, 128>}, {pipeline_mode = #tpu.pipeline_mode<synchronous>, transform_indices = @transform_5, window_bounds = array<i64: 1, 128>}, {transform_indices = @transform_6, window_bounds = array<i64: 8, 128>}]} {
    %c0 = arith.constant 0 : index
    %c0_0 = arith.constant 0 : index
    %0 = vector.load %arg2[%c0, %c0_0] : memref<1x128xf32, #tpu.memory_space<vmem>>, vector<1x128xf32>
    %c0_1 = arith.constant 0 : index
    %c0_2 = arith.constant 0 : index
    %1 = vector.load %arg3[%c0_1, %c0_2] : memref<20x128xf32, #tpu.memory_space<vmem>>, vector<20x128xf32>
    %c0_3 = arith.constant 0 : index
    %c0_4 = arith.constant 0 : index
    %2 = vector.load %arg4[%c0_3, %c0_4] : memref<1x128xf32, #tpu.memory_space<vmem>>, vector<1x128xf32>
    %c0_5 = arith.constant 0 : index
    %c0_6 = arith.constant 0 : index
    %3 = vector.load %arg1[%c0_5, %c0_6] : memref<8x8xf32, #tpu.memory_space<vmem>>, vector<8x8xf32>
    %4 = tpu.transpose %3, [1, 0] : vector<8x8xf32> -> vector<8x8xf32>
    %5 = vector.shape_cast %4 : vector<8x8xf32> to vector<8x8x1xf32>
    %6 = vector.shape_cast %0 : vector<1x128xf32> to vector<1x1x128xf32>
    %7 = vector.broadcast %5 : vector<8x8x1xf32> to vector<8x8x128xf32>
    %8 = vector.broadcast %6 : vector<1x1x128xf32> to vector<8x8x128xf32>
    %9 = arith.mulf %7, %8 : vector<8x8x128xf32>
    %10 = vector.shape_cast %2 : vector<1x128xf32> to vector<1x1x128xf32>
    %11 = vector.broadcast %10 : vector<1x1x128xf32> to vector<8x8x128xf32>
    %12 = arith.addf %9, %11 : vector<8x8x128xf32>
    %c0_7 = arith.constant 0 : index
    %c0_8 = arith.constant 0 : index
    %c0_9 = arith.constant 0 : index
    %13 = vector.load %arg8[%c0_7, %c0_8, %c0_9] : memref<8x8x128xf32, #tpu.memory_space<vmem>>, vector<8x8x128xf32>
    tpu.vector_store %arg8[%c0_7, %c0_8, %c0_9], %12 {strides = array<i32>} : memref<8x8x128xf32, #tpu.memory_space<vmem>>, vector<8x8x128xf32>,
    %cst = arith.constant 0.000000e+00 : f32
    %14 = vector.broadcast %cst : f32 to vector<8x20xf32>
    %cst_10 = arith.constant 0.000000e+00 : f32
    %15 = vector.broadcast %cst_10 : f32 to vector<8x20xf32>
    %c0_i32 = arith.constant 0 : i32
    %16 = arith.index_cast %c0_i32 : i32 to index
    %c0_11 = arith.constant 0 : index
    %c0_12 = arith.constant 0 : index
    %17 = vector.load %arg8[%16, %c0_11, %c0_12] : memref<8x8x128xf32, #tpu.memory_space<vmem>>, vector<1x8x128xf32>
    %18 = vector.shape_cast %17 : vector<1x8x128xf32> to vector<8x128xf32>
    %cst_13 = arith.constant dense<0.000000e+00> : vector<8x128xf32>
    %19 = tpu.matmul %14, %1, %cst_13 {dimension_numbers = #tpu.dot_dimension_numbers<[1], [0], [0], [1], [0, 0, 1, 1], [], []>} : vector<8x20xf32>, vector<20x128xf32>, vector<8x128xf32> -> vector<8x128xf32>
    %20 = arith.addf %18, %19 : vector<8x128xf32>
    %21 = arith.negf %20 : vector<8x128xf32>
    %22 = math.exp %21 : vector<8x128xf32>
    %cst_14 = arith.constant 1.000000e+00 : f32
    %23 = vector.broadcast %cst_14 : f32 to vector<8x128xf32>
    %24 = arith.addf %23, %22 : vector<8x128xf32>
    %25 = arith.divf %23, %24 : vector<8x128xf32>
    %26 = math.tanh %20 : vector<8x128xf32>
    %27 = vector.extract_strided_slice %25 {offsets = [0, 0], sizes = [8, 20], strides = [1, 1]} : vector<8x128xf32> to vector<8x20xf32>
    %28 = vector.extract_strided_slice %25 {offsets = [0, 20], sizes = [8, 20], strides = [1, 1]} : vector<8x128xf32> to vector<8x20xf32>
    %29 = vector.extract_strided_slice %26 {offsets = [0, 40], sizes = [8, 20], strides = [1, 1]} : vector<8x128xf32> to vector<8x20xf32>
    %30 = vector.extract_strided_slice %25 {offsets = [0, 60], sizes = [8, 20], strides = [1, 1]} : vector<8x128xf32> to vector<8x20xf32>
    %31 = arith.mulf %28, %15 : vector<8x20xf32>
    %32 = arith.mulf %27, %29 : vector<8x20xf32>
    %33 = arith.addf %31, %32 : vector<8x20xf32>
    %34 = math.tanh %33 : vector<8x20xf32>
    %35 = arith.mulf %30, %34 : vector<8x20xf32>
    %c1_i32 = arith.constant 1 : i32
    %36 = arith.index_cast %c1_i32 : i32 to index
    %c0_15 = arith.constant 0 : index
    %c0_16 = arith.constant 0 : index
    %37 = vector.load %arg8[%36, %c0_15, %c0_16] : memref<8x8x128xf32, #tpu.memory_space<vmem>>, vector<1x8x128xf32>
    %38 = vector.shape_cast %37 : vector<1x8x128xf32> to vector<8x128xf32>
    %cst_17 = arith.constant dense<0.000000e+00> : vector<8x128xf32>
    %39 = tpu.matmul %35, %1, %cst_17 {dimension_numbers = #tpu.dot_dimension_numbers<[1], [0], [0], [1], [0, 0, 1, 1], [], []>} : vector<8x20xf32>, vector<20x128xf32>, vector<8x128xf32> -> vector<8x128xf32>
    %40 = arith.addf %38, %39 : vector<8x128xf32>
    %41 = arith.negf %40 : vector<8x128xf32>
    %42 = math.exp %41 : vector<8x128xf32>
    %cst_18 = arith.constant 1.000000e+00 : f32
    %43 = vector.broadcast %cst_18 : f32 to vector<8x128xf32>
    %44 = arith.addf %43, %42 : vector<8x128xf32>
    %45 = arith.divf %43, %44 : vector<8x128xf32>
    %46 = math.tanh %40 : vector<8x128xf32>
    %47 = vector.extract_strided_slice %45 {offsets = [0, 0], sizes = [8, 20], strides = [1, 1]} : vector<8x128xf32> to vector<8x20xf32>
    %48 = vector.extract_strided_slice %45 {offsets = [0, 20], sizes = [8, 20], strides = [1, 1]} : vector<8x128xf32> to vector<8x20xf32>
    %49 = vector.extract_strided_slice %46 {offsets = [0, 40], sizes = [8, 20], strides = [1, 1]} : vector<8x128xf32> to vector<8x20xf32>
    %50 = vector.extract_strided_slice %45 {offsets = [0, 60], sizes = [8, 20], strides = [1, 1]} : vector<8x128xf32> to vector<8x20xf32>
    %51 = arith.mulf %48, %33 : vector<8x20xf32>
    %52 = arith.mulf %47, %49 : vector<8x20xf32>
    %53 = arith.addf %51, %52 : vector<8x20xf32>
    %54 = math.tanh %53 : vector<8x20xf32>
    %55 = arith.mulf %50, %54 : vector<8x20xf32>
    %c2_i32 = arith.constant 2 : i32
    %56 = arith.index_cast %c2_i32 : i32 to index
    %c0_19 = arith.constant 0 : index
    %c0_20 = arith.constant 0 : index
    %57 = vector.load %arg8[%56, %c0_19, %c0_20] : memref<8x8x128xf32, #tpu.memory_space<vmem>>, vector<1x8x128xf32>
    %58 = vector.shape_cast %57 : vector<1x8x128xf32> to vector<8x128xf32>
    %cst_21 = arith.constant dense<0.000000e+00> : vector<8x128xf32>
    %59 = tpu.matmul %55, %1, %cst_21 {dimension_numbers = #tpu.dot_dimension_numbers<[1], [0], [0], [1], [0, 0, 1, 1], [], []>} : vector<8x20xf32>, vector<20x128xf32>, vector<8x128xf32> -> vector<8x128xf32>
    %60 = arith.addf %58, %59 : vector<8x128xf32>
    %61 = arith.negf %60 : vector<8x128xf32>
    %62 = math.exp %61 : vector<8x128xf32>
    %cst_22 = arith.constant 1.000000e+00 : f32
    %63 = vector.broadcast %cst_22 : f32 to vector<8x128xf32>
    %64 = arith.addf %63, %62 : vector<8x128xf32>
    %65 = arith.divf %63, %64 : vector<8x128xf32>
    %66 = math.tanh %60 : vector<8x128xf32>
    %67 = vector.extract_strided_slice %65 {offsets = [0, 0], sizes = [8, 20], strides = [1, 1]} : vector<8x128xf32> to vector<8x20xf32>
    %68 = vector.extract_strided_slice %65 {offsets = [0, 20], sizes = [8, 20], strides = [1, 1]} : vector<8x128xf32> to vector<8x20xf32>
    %69 = vector.extract_strided_slice %66 {offsets = [0, 40], sizes = [8, 20], strides = [1, 1]} : vector<8x128xf32> to vector<8x20xf32>
    %70 = vector.extract_strided_slice %65 {offsets = [0, 60], sizes = [8, 20], strides = [1, 1]} : vector<8x128xf32> to vector<8x20xf32>
    %71 = arith.mulf %68, %53 : vector<8x20xf32>
    %72 = arith.mulf %67, %69 : vector<8x20xf32>
    %73 = arith.addf %71, %72 : vector<8x20xf32>
    %74 = math.tanh %73 : vector<8x20xf32>
    %75 = arith.mulf %70, %74 : vector<8x20xf32>
    %c3_i32 = arith.constant 3 : i32
    %76 = arith.index_cast %c3_i32 : i32 to index
    %c0_23 = arith.constant 0 : index
    %c0_24 = arith.constant 0 : index
    %77 = vector.load %arg8[%76, %c0_23, %c0_24] : memref<8x8x128xf32, #tpu.memory_space<vmem>>, vector<1x8x128xf32>
    %78 = vector.shape_cast %77 : vector<1x8x128xf32> to vector<8x128xf32>
    %cst_25 = arith.constant dense<0.000000e+00> : vector<8x128xf32>
    %79 = tpu.matmul %75, %1, %cst_25 {dimension_numbers = #tpu.dot_dimension_numbers<[1], [0], [0], [1], [0, 0, 1, 1], [], []>} : vector<8x20xf32>, vector<20x128xf32>, vector<8x128xf32> -> vector<8x128xf32>
    %80 = arith.addf %78, %79 : vector<8x128xf32>
    %81 = arith.negf %80 : vector<8x128xf32>
    %82 = math.exp %81 : vector<8x128xf32>
    %cst_26 = arith.constant 1.000000e+00 : f32
    %83 = vector.broadcast %cst_26 : f32 to vector<8x128xf32>
    %84 = arith.addf %83, %82 : vector<8x128xf32>
    %85 = arith.divf %83, %84 : vector<8x128xf32>
    %86 = math.tanh %80 : vector<8x128xf32>
    %87 = vector.extract_strided_slice %85 {offsets = [0, 0], sizes = [8, 20], strides = [1, 1]} : vector<8x128xf32> to vector<8x20xf32>
    %88 = vector.extract_strided_slice %85 {offsets = [0, 20], sizes = [8, 20], strides = [1, 1]} : vector<8x128xf32> to vector<8x20xf32>
    %89 = vector.extract_strided_slice %86 {offsets = [0, 40], sizes = [8, 20], strides = [1, 1]} : vector<8x128xf32> to vector<8x20xf32>
    %90 = vector.extract_strided_slice %85 {offsets = [0, 60], sizes = [8, 20], strides = [1, 1]} : vector<8x128xf32> to vector<8x20xf32>
    %91 = arith.mulf %88, %73 : vector<8x20xf32>
    %92 = arith.mulf %87, %89 : vector<8x20xf32>
    %93 = arith.addf %91, %92 : vector<8x20xf32>
    %94 = math.tanh %93 : vector<8x20xf32>
    %95 = arith.mulf %90, %94 : vector<8x20xf32>
    %c4_i32 = arith.constant 4 : i32
    %96 = arith.index_cast %c4_i32 : i32 to index
    %c0_27 = arith.constant 0 : index
    %c0_28 = arith.constant 0 : index
    %97 = vector.load %arg8[%96, %c0_27, %c0_28] : memref<8x8x128xf32, #tpu.memory_space<vmem>>, vector<1x8x128xf32>
    %98 = vector.shape_cast %97 : vector<1x8x128xf32> to vector<8x128xf32>
    %cst_29 = arith.constant dense<0.000000e+00> : vector<8x128xf32>
    %99 = tpu.matmul %95, %1, %cst_29 {dimension_numbers = #tpu.dot_dimension_numbers<[1], [0], [0], [1], [0, 0, 1, 1], [], []>} : vector<8x20xf32>, vector<20x128xf32>, vector<8x128xf32> -> vector<8x128xf32>
    %100 = arith.addf %98, %99 : vector<8x128xf32>
    %101 = arith.negf %100 : vector<8x128xf32>
    %102 = math.exp %101 : vector<8x128xf32>
    %cst_30 = arith.constant 1.000000e+00 : f32
    %103 = vector.broadcast %cst_30 : f32 to vector<8x128xf32>
    %104 = arith.addf %103, %102 : vector<8x128xf32>
    %105 = arith.divf %103, %104 : vector<8x128xf32>
    %106 = math.tanh %100 : vector<8x128xf32>
    %107 = vector.extract_strided_slice %105 {offsets = [0, 0], sizes = [8, 20], strides = [1, 1]} : vector<8x128xf32> to vector<8x20xf32>
    %108 = vector.extract_strided_slice %105 {offsets = [0, 20], sizes = [8, 20], strides = [1, 1]} : vector<8x128xf32> to vector<8x20xf32>
    %109 = vector.extract_strided_slice %106 {offsets = [0, 40], sizes = [8, 20], strides = [1, 1]} : vector<8x128xf32> to vector<8x20xf32>
    %110 = vector.extract_strided_slice %105 {offsets = [0, 60], sizes = [8, 20], strides = [1, 1]} : vector<8x128xf32> to vector<8x20xf32>
    %111 = arith.mulf %108, %93 : vector<8x20xf32>
    %112 = arith.mulf %107, %109 : vector<8x20xf32>
    %113 = arith.addf %111, %112 : vector<8x20xf32>
    %114 = math.tanh %113 : vector<8x20xf32>
    %115 = arith.mulf %110, %114 : vector<8x20xf32>
    %c5_i32 = arith.constant 5 : i32
    %116 = arith.index_cast %c5_i32 : i32 to index
    %c0_31 = arith.constant 0 : index
    %c0_32 = arith.constant 0 : index
    %117 = vector.load %arg8[%116, %c0_31, %c0_32] : memref<8x8x128xf32, #tpu.memory_space<vmem>>, vector<1x8x128xf32>
    %118 = vector.shape_cast %117 : vector<1x8x128xf32> to vector<8x128xf32>
    %cst_33 = arith.constant dense<0.000000e+00> : vector<8x128xf32>
    %119 = tpu.matmul %115, %1, %cst_33 {dimension_numbers = #tpu.dot_dimension_numbers<[1], [0], [0], [1], [0, 0, 1, 1], [], []>} : vector<8x20xf32>, vector<20x128xf32>, vector<8x128xf32> -> vector<8x128xf32>
    %120 = arith.addf %118, %119 : vector<8x128xf32>
    %121 = arith.negf %120 : vector<8x128xf32>
    %122 = math.exp %121 : vector<8x128xf32>
    %cst_34 = arith.constant 1.000000e+00 : f32
    %123 = vector.broadcast %cst_34 : f32 to vector<8x128xf32>
    %124 = arith.addf %123, %122 : vector<8x128xf32>
    %125 = arith.divf %123, %124 : vector<8x128xf32>
    %126 = math.tanh %120 : vector<8x128xf32>
    %127 = vector.extract_strided_slice %125 {offsets = [0, 0], sizes = [8, 20], strides = [1, 1]} : vector<8x128xf32> to vector<8x20xf32>
    %128 = vector.extract_strided_slice %125 {offsets = [0, 20], sizes = [8, 20], strides = [1, 1]} : vector<8x128xf32> to vector<8x20xf32>
    %129 = vector.extract_strided_slice %126 {offsets = [0, 40], sizes = [8, 20], strides = [1, 1]} : vector<8x128xf32> to vector<8x20xf32>
    %130 = vector.extract_strided_slice %125 {offsets = [0, 60], sizes = [8, 20], strides = [1, 1]} : vector<8x128xf32> to vector<8x20xf32>
    %131 = arith.mulf %128, %113 : vector<8x20xf32>
    %132 = arith.mulf %127, %129 : vector<8x20xf32>
    %133 = arith.addf %131, %132 : vector<8x20xf32>
    %134 = math.tanh %133 : vector<8x20xf32>
    %135 = arith.mulf %130, %134 : vector<8x20xf32>
    %c6_i32 = arith.constant 6 : i32
    %136 = arith.index_cast %c6_i32 : i32 to index
    %c0_35 = arith.constant 0 : index
    %c0_36 = arith.constant 0 : index
    %137 = vector.load %arg8[%136, %c0_35, %c0_36] : memref<8x8x128xf32, #tpu.memory_space<vmem>>, vector<1x8x128xf32>
    %138 = vector.shape_cast %137 : vector<1x8x128xf32> to vector<8x128xf32>
    %cst_37 = arith.constant dense<0.000000e+00> : vector<8x128xf32>
    %139 = tpu.matmul %135, %1, %cst_37 {dimension_numbers = #tpu.dot_dimension_numbers<[1], [0], [0], [1], [0, 0, 1, 1], [], []>} : vector<8x20xf32>, vector<20x128xf32>, vector<8x128xf32> -> vector<8x128xf32>
    %140 = arith.addf %138, %139 : vector<8x128xf32>
    %141 = arith.negf %140 : vector<8x128xf32>
    %142 = math.exp %141 : vector<8x128xf32>
    %cst_38 = arith.constant 1.000000e+00 : f32
    %143 = vector.broadcast %cst_38 : f32 to vector<8x128xf32>
    %144 = arith.addf %143, %142 : vector<8x128xf32>
    %145 = arith.divf %143, %144 : vector<8x128xf32>
    %146 = math.tanh %140 : vector<8x128xf32>
    %147 = vector.extract_strided_slice %145 {offsets = [0, 0], sizes = [8, 20], strides = [1, 1]} : vector<8x128xf32> to vector<8x20xf32>
    %148 = vector.extract_strided_slice %145 {offsets = [0, 20], sizes = [8, 20], strides = [1, 1]} : vector<8x128xf32> to vector<8x20xf32>
    %149 = vector.extract_strided_slice %146 {offsets = [0, 40], sizes = [8, 20], strides = [1, 1]} : vector<8x128xf32> to vector<8x20xf32>
    %150 = vector.extract_strided_slice %145 {offsets = [0, 60], sizes = [8, 20], strides = [1, 1]} : vector<8x128xf32> to vector<8x20xf32>
    %151 = arith.mulf %148, %133 : vector<8x20xf32>
    %152 = arith.mulf %147, %149 : vector<8x20xf32>
    %153 = arith.addf %151, %152 : vector<8x20xf32>
    %154 = math.tanh %153 : vector<8x20xf32>
    %155 = arith.mulf %150, %154 : vector<8x20xf32>
    %c7_i32 = arith.constant 7 : i32
    %156 = arith.index_cast %c7_i32 : i32 to index
    %c0_39 = arith.constant 0 : index
    %c0_40 = arith.constant 0 : index
    %157 = vector.load %arg8[%156, %c0_39, %c0_40] : memref<8x8x128xf32, #tpu.memory_space<vmem>>, vector<1x8x128xf32>
    %158 = vector.shape_cast %157 : vector<1x8x128xf32> to vector<8x128xf32>
    %cst_41 = arith.constant dense<0.000000e+00> : vector<8x128xf32>
    %159 = tpu.matmul %155, %1, %cst_41 {dimension_numbers = #tpu.dot_dimension_numbers<[1], [0], [0], [1], [0, 0, 1, 1], [], []>} : vector<8x20xf32>, vector<20x128xf32>, vector<8x128xf32> -> vector<8x128xf32>
    %160 = arith.addf %158, %159 : vector<8x128xf32>
    %161 = arith.negf %160 : vector<8x128xf32>
    %162 = math.exp %161 : vector<8x128xf32>
    %cst_42 = arith.constant 1.000000e+00 : f32
    %163 = vector.broadcast %cst_42 : f32 to vector<8x128xf32>
    %164 = arith.addf %163, %162 : vector<8x128xf32>
    %165 = arith.divf %163, %164 : vector<8x128xf32>
    %166 = math.tanh %160 : vector<8x128xf32>
    %167 = vector.extract_strided_slice %165 {offsets = [0, 0], sizes = [8, 20], strides = [1, 1]} : vector<8x128xf32> to vector<8x20xf32>
    %168 = vector.extract_strided_slice %165 {offsets = [0, 20], sizes = [8, 20], strides = [1, 1]} : vector<8x128xf32> to vector<8x20xf32>
    %169 = vector.extract_strided_slice %166 {offsets = [0, 40], sizes = [8, 20], strides = [1, 1]} : vector<8x128xf32> to vector<8x20xf32>
    %170 = vector.extract_strided_slice %165 {offsets = [0, 60], sizes = [8, 20], strides = [1, 1]} : vector<8x128xf32> to vector<8x20xf32>
    %171 = arith.mulf %168, %153 : vector<8x20xf32>
    %172 = arith.mulf %167, %169 : vector<8x20xf32>
    %173 = arith.addf %171, %172 : vector<8x20xf32>
    %174 = math.tanh %173 : vector<8x20xf32>
    %175 = arith.mulf %170, %174 : vector<8x20xf32>
    %c8_i32 = arith.constant 8 : i32
    %c0_43 = arith.constant 0 : index
    %c0_44 = arith.constant 0 : index
    %176 = vector.load %arg5[%c0_43, %c0_44] : memref<20x128xf32, #tpu.memory_space<vmem>>, vector<20x128xf32>
    %cst_45 = arith.constant dense<0.000000e+00> : vector<8x128xf32>
    %177 = tpu.matmul %175, %176, %cst_45 {dimension_numbers = #tpu.dot_dimension_numbers<[1], [0], [0], [1], [0, 0, 1, 1], [], []>} : vector<8x20xf32>, vector<20x128xf32>, vector<8x128xf32> -> vector<8x128xf32>
    %c0_46 = arith.constant 0 : index
    %c0_47 = arith.constant 0 : index
    %178 = vector.load %arg6[%c0_46, %c0_47] : memref<1x128xf32, #tpu.memory_space<vmem>>, vector<1x128xf32>
    %179 = vector.broadcast %178 : vector<1x128xf32> to vector<8x128xf32>
    %180 = arith.addf %177, %179 : vector<8x128xf32>
    %c0_48 = arith.constant 0 : index
    %c0_49 = arith.constant 0 : index
    %181 = vector.load %arg7[%c0_48, %c0_49] : memref<8x128xf32, #tpu.memory_space<vmem>>, vector<8x128xf32>
    tpu.vector_store %arg7[%c0_48, %c0_49], %180 {strides = array<i32>} : memref<8x128xf32, #tpu.memory_space<vmem>>, vector<8x128xf32>,
    return
  }
  func.func @transform_0(%arg0: i32) -> (i32, i32) {
    %c0_i32 = arith.constant 0 : i32
    %c0_i32_0 = arith.constant 0 : i32
    return %arg0, %c0_i32 : i32, i32
  }
  func.func @transform_1(%arg0: i32) -> (i32, i32) {
    %c0_i32 = arith.constant 0 : i32
    %c0_i32_0 = arith.constant 0 : i32
    %c0_i32_1 = arith.constant 0 : i32
    return %c0_i32, %c0_i32_0 : i32, i32
  }
  func.func @transform_2(%arg0: i32) -> (i32, i32) {
    %c0_i32 = arith.constant 0 : i32
    %c0_i32_0 = arith.constant 0 : i32
    %c0_i32_1 = arith.constant 0 : i32
    return %c0_i32, %c0_i32_0 : i32, i32
  }
  func.func @transform_3(%arg0: i32) -> (i32, i32) {
    %c0_i32 = arith.constant 0 : i32
    %c0_i32_0 = arith.constant 0 : i32
    %c0_i32_1 = arith.constant 0 : i32
    return %c0_i32, %c0_i32_0 : i32, i32
  }
  func.func @transform_4(%arg0: i32) -> (i32, i32) {
    %c0_i32 = arith.constant 0 : i32
    %c0_i32_0 = arith.constant 0 : i32
    %c0_i32_1 = arith.constant 0 : i32
    return %c0_i32, %c0_i32_0 : i32, i32
  }
  func.func @transform_5(%arg0: i32) -> (i32, i32) {
    %c0_i32 = arith.constant 0 : i32
    %c0_i32_0 = arith.constant 0 : i32
    %c0_i32_1 = arith.constant 0 : i32
    return %c0_i32, %c0_i32_0 : i32, i32
  }
  func.func @transform_6(%arg0: i32) -> (i32, i32) {
    %c0_i32 = arith.constant 0 : i32
    %c0_i32_0 = arith.constant 0 : i32
    return %arg0, %c0_i32 : i32, i32
  }
}

</mosaic_0001>

<llo_original>
// kernel: tpu_custom_call.1
$region0: #{tpu_custom_call.1}
  #allocation0 [shape = 'u32[]', space=smem, size = 0x4, offset = 0x4, fixed_abs, tag = 'smem constant byte address 0x4 - core index']
  #allocation1 [shape = 'u32[144,128]{1,0:T(1,128)}', space=vmem, size = 0x12000, scoped, tag = 'internal scratch']
  #allocation2 [shape = 'f32[8,8,128]{2,1,0:T(8,128)}', space=vmem, size = 0x8000, scoped, tag = 'scratch operand']
  %s0 = inlined_call_operand.hbm [shape: f32[8,8], index: 0, kind: input, shape index: {}]
  %s1 = inlined_call_operand.vmem [shape: f32[1,128], index: 1, kind: input, shape index: {}]
  %s2 = inlined_call_operand.hbm [shape: f32[20,128], index: 2, kind: input, shape index: {}]
  %s3 = inlined_call_operand.vmem [shape: f32[1,128], index: 3, kind: input, shape index: {}]
  %s4 = inlined_call_operand.hbm [shape: f32[20,128], index: 4, kind: input, shape index: {}]
  %s5 = inlined_call_operand.vmem [shape: f32[1,128], index: 5, kind: input, shape index: {}]
  %s6 = inlined_call_operand.hbm [shape: f32[8,128], index: 6, kind: output, shape index: {}]
  %s7 = sld [smem:[#allocation0]]
  $region46: #{tpu_custom_call.1} parent=0
    _
  %s9 = ssub.s32 1, %s7
  %s10 = scalar_select 0, %s9, %s7
  $region1: #{tpu_custom_call.1} parent=0
    #allocation3 [shape = 'u8[4096]{0}', space=vmem, size = 0x1000, scoped, tag = 'input window, operand 0, single buffered']
    #allocation4 [shape = 's32[1]{0}', space=sflag, size = 0x4, scoped, tag = 'scoped memory for tpu_custom_call.1']
    #allocation5 [shape = 's32[1]{0}', space=sflag, size = 0x4, scoped, tag = 'scoped memory for tpu_custom_call.1']
    #allocation6 [shape = 'u8[12288]{0}', space=vmem, size = 0x3000, scoped, tag = 'input window, operand 2, single buffered']
    #allocation7 [shape = 's32[1]{0}', space=sflag, size = 0x4, scoped, tag = 'scoped memory for tpu_custom_call.1']
    #allocation8 [shape = 'u8[12288]{0}', space=vmem, size = 0x3000, scoped, tag = 'input window, operand 4, single buffered']
    #allocation9 [shape = 'u8[4096]{0}', space=vmem, size = 0x1000, scoped, tag = 'output window, operand 0, single buffered']
    %11 = vsyncpa [#allocation4], 0
    %12 = vsyncpa [#allocation7], 0
    %13 = vsyncpa [#allocation5], 0
    // Predicated region
    $region2: #{tpu_custom_call.1} parent=1 // pred_check
      _
    $region3: #{tpu_custom_call.1} parent=1 // pred_check_branch
      %15 = sbr.rel (0) target = $region5
    $region4: #{tpu_custom_call.1} parent=1 // pred_region
      %s17 = ssub.s32 128, 128
      %18 = vsyncadd [#allocation4], %s17
      %s20 = sshll.u32 [#allocation3], 4
      %s21 = int_to_ptr.vmem [resolvable:$true] %s20
      %23 = dma.hbm_to_vmem [thread:$0]  %s0, 128, %s21, [#allocation4]
    $region5: #{tpu_custom_call.1} parent=1 // pred_fallthru
      _
    // Predicated region
    $region6: #{tpu_custom_call.1} parent=1 // pred_check
      _
    $region7: #{tpu_custom_call.1} parent=1 // pred_check_branch
      %25 = sbr.rel (0) target = $region9
    $region8: #{tpu_custom_call.1} parent=1 // pred_region
      _
    $region9: #{tpu_custom_call.1} parent=1 // pred_fallthru
      _
    // Predicated region
    $region10: #{tpu_custom_call.1} parent=1 // pred_check
      _
    $region11: #{tpu_custom_call.1} parent=1 // pred_check_branch
      %27 = sbr.rel (0) target = $region13
    $region12: #{tpu_custom_call.1} parent=1 // pred_region
      %s29 = ssub.s32 384, 384
      %30 = vsyncadd [#allocation7], %s29
      %s31 = sshll.u32 [#allocation6], 4
      %s32 = int_to_ptr.vmem [resolvable:$true] %s31
      %37 = dma.hbm_to_vmem [thread:$0]  %s2, 384, %s32, [#allocation7], 128, 128, 8
    $region13: #{tpu_custom_call.1} parent=1 // pred_fallthru
      _
    // Predicated region
    $region14: #{tpu_custom_call.1} parent=1 // pred_check
      _
    $region15: #{tpu_custom_call.1} parent=1 // pred_check_branch
      %39 = sbr.rel (0) target = $region17
    $region16: #{tpu_custom_call.1} parent=1 // pred_region
      _
    $region17: #{tpu_custom_call.1} parent=1 // pred_fallthru
      _
    // Predicated region
    $region18: #{tpu_custom_call.1} parent=1 // pred_check
      _
    $region19: #{tpu_custom_call.1} parent=1 // pred_check_branch
      %41 = sbr.rel (0) target = $region21
    $region20: #{tpu_custom_call.1} parent=1 // pred_region
      %s43 = ssub.s32 384, 384
      %44 = vsyncadd [#allocation7], %s43
      %s45 = sshll.u32 [#allocation8], 4
      %s46 = int_to_ptr.vmem [resolvable:$true] %s45
      %51 = dma.hbm_to_vmem [thread:$0]  %s4, 384, %s46, [#allocation7], 128, 128, 8
    $region21: #{tpu_custom_call.1} parent=1 // pred_fallthru
      _
    // Predicated region
    $region22: #{tpu_custom_call.1} parent=1 // pred_check
      _
    $region23: #{tpu_custom_call.1} parent=1 // pred_check_branch
      %53 = sbr.rel (0) target = $region25
    $region24: #{tpu_custom_call.1} parent=1 // pred_region
      _
    $region25: #{tpu_custom_call.1} parent=1 // pred_fallthru
      _
    // Predicated region
    $region26: #{tpu_custom_call.1} parent=1 // pred_check
      _
    $region27: #{tpu_custom_call.1} parent=1 // pred_check_branch
      %55 = sbr.rel (0) target = $region29
    $region28: #{tpu_custom_call.1} parent=1 // pred_region
      %56 = dma.done [#allocation4], 128
    $region29: #{tpu_custom_call.1} parent=1 // pred_fallthru
      _
    // Predicated region
    $region30: #{tpu_custom_call.1} parent=1 // pred_check
      _
    $region31: #{tpu_custom_call.1} parent=1 // pred_check_branch
      %58 = sbr.rel (0) target = $region33
    $region32: #{tpu_custom_call.1} parent=1 // pred_region
      %59 = dma.done [#allocation7], 384
    $region33: #{tpu_custom_call.1} parent=1 // pred_fallthru
      _
    // Predicated region
    $region34: #{tpu_custom_call.1} parent=1 // pred_check
      _
    $region35: #{tpu_custom_call.1} parent=1 // pred_check_branch
      %61 = sbr.rel (0) target = $region37
    $region36: #{tpu_custom_call.1} parent=1 // pred_region
      %62 = dma.done [#allocation7], 384
    $region37: #{tpu_custom_call.1} parent=1 // pred_fallthru
      _
    %v63 = vld [vmem:[%s1] sm:$0x1]
    %v64 = vld [vmem:[#allocation6] sm:$0xff]
    %v65 = vld [vmem:[#allocation6 + $0x8] sm:$0xff]
    %v66 = vld [vmem:[#allocation6 + $0x10] sm:$0xf]
    %v67 = vld [vmem:[%s3] sm:$0x1]
    %v68 = vld [vmem:[#allocation3] sm:$0xff]
    %69 = vxpose.xlu0.b32.start [1/16] %v68, 128
    %70 = vxpose.xlu0.b32.cont [2/16] 0.0, 128
    %71 = vxpose.xlu0.b32.cont [3/16] 0.0, 128
    %72 = vxpose.xlu0.b32.cont [4/16] 0.0, 128
    %73 = vxpose.xlu0.b32.cont [5/16] 0.0, 128
    %74 = vxpose.xlu0.b32.cont [6/16] 0.0, 128
    %75 = vxpose.xlu0.b32.cont [7/16] 0.0, 128
    %76 = vxpose.xlu0.b32.cont [8/16] 0.0, 128
    %77 = vxpose.xlu0.b32.cont [9/16] 0.0, 128
    %78 = vxpose.xlu0.b32.cont [10/16] 0.0, 128
    %79 = vxpose.xlu0.b32.cont [11/16] 0.0, 128
    %80 = vxpose.xlu0.b32.cont [12/16] 0.0, 128
    %81 = vxpose.xlu0.b32.cont [13/16] 0.0, 128
    %82 = vxpose.xlu0.b32.cont [14/16] 0.0, 128
    %83 = vxpose.xlu0.b32.cont [15/16] 0.0, 128
    %84 = vxpose.xlu0.b32.end [16/16] 0.0, 128
    %v85 = vpop.trf.xlu0
    %v86 = vpop.trf.xlu0
    %v87 = vpop.trf.xlu0
    %v88 = vpop.trf.xlu0
    %v89 = vpop.trf.xlu0
    %v90 = vpop.trf.xlu0
    %v91 = vpop.trf.xlu0
    %v92 = vpop.trf.xlu0
    %v93 = vpop.trf.xlu0
    %v94 = vpop.trf.xlu0
    %v95 = vpop.trf.xlu0
    %v96 = vpop.trf.xlu0
    %v97 = vpop.trf.xlu0
    %v98 = vpop.trf.xlu0
    %v99 = vpop.trf.xlu0
    %v100 = vpop.trf.xlu0
    %v101 = vlaneseq
    %v102 = vshrl.u32 %v101, 7
    %v103 = vsub.s32 0, %v102
    %v104 = vrot.slane %v85, %v103
    %106 = vbcast.lane.b32.xlu0 %v104, 256
    %v107 = vpop.permute.xlu0 %106
    %v108 = vlaneseq
    %v109 = vshrl.u32 %v108, 7
    %v110 = vsub.s32 1, %v109
    %v111 = vrot.slane %v85, %v110
    %113 = vbcast.lane.b32.xlu0 %v111, 256
    %v114 = vpop.permute.xlu0 %113
    %v115 = vlaneseq
    %v116 = vshrl.u32 %v115, 7
    %v117 = vsub.s32 2, %v116
    %v118 = vrot.slane %v85, %v117
    %120 = vbcast.lane.b32.xlu0 %v118, 256
    %v121 = vpop.permute.xlu0 %120
    %v122 = vlaneseq
    %v123 = vshrl.u32 %v122, 7
    %v124 = vsub.s32 3, %v123
    %v125 = vrot.slane %v85, %v124
    %127 = vbcast.lane.b32.xlu0 %v125, 256
    %v128 = vpop.permute.xlu0 %127
    %v129 = vlaneseq
    %v130 = vshrl.u32 %v129, 7
    %v131 = vsub.s32 4, %v130
    %v132 = vrot.slane %v85, %v131
    %134 = vbcast.lane.b32.xlu0 %v132, 256
    %v135 = vpop.permute.xlu0 %134
    %v136 = vlaneseq
    %v137 = vshrl.u32 %v136, 7
    %v138 = vsub.s32 5, %v137
    %v139 = vrot.slane %v85, %v138
    %141 = vbcast.lane.b32.xlu0 %v139, 256
    %v142 = vpop.permute.xlu0 %141
    %v143 = vlaneseq
    %v144 = vshrl.u32 %v143, 7
    %v145 = vsub.s32 6, %v144
    %v146 = vrot.slane %v85, %v145
    %148 = vbcast.lane.b32.xlu0 %v146, 256
    %v149 = vpop.permute.xlu0 %148
    %v150 = vlaneseq
    %v151 = vshrl.u32 %v150, 7
    %v152 = vsub.s32 7, %v151
    %v153 = vrot.slane %v85, %v152
    %155 = vbcast.lane.b32.xlu0 %v153, 256
    %v156 = vpop.permute.xlu0 %155
    %v158 = vlaneseq
    %v159 = vshrl.u32 %v158, 7
    %v160 = vsub.s32 0, %v159
    %v161 = vrot.slane %v63, %v160
    %v163 = vmul.f32 %v107, %v161
    %v164 = vmul.f32 %v114, %v161
    %v165 = vmul.f32 %v121, %v161
    %v166 = vmul.f32 %v128, %v161
    %v167 = vmul.f32 %v135, %v161
    %v168 = vmul.f32 %v142, %v161
    %v169 = vmul.f32 %v149, %v161
    %v170 = vmul.f32 %v156, %v161
    %v172 = vlaneseq
    %v173 = vshrl.u32 %v172, 7
    %v174 = vsub.s32 0, %v173
    %v175 = vrot.slane %v67, %v174
    %v177 = vadd.f32 %v163, %v175
    %v178 = vadd.f32 %v164, %v175
    %v179 = vadd.f32 %v165, %v175
    %v180 = vadd.f32 %v166, %v175
    %v181 = vadd.f32 %v167, %v175
    %v182 = vadd.f32 %v168, %v175
    %v183 = vadd.f32 %v169, %v175
    %v184 = vadd.f32 %v170, %v175
    %185 = vst [vmem:[#allocation2] sm:$0xff] %v177
    %186 = vst [vmem:[#allocation2 + $0x8] sm:$0xff] %v178
    %187 = vst [vmem:[#allocation2 + $0x10] sm:$0xff] %v179
    %188 = vst [vmem:[#allocation2 + $0x18] sm:$0xff] %v180
    %189 = vst [vmem:[#allocation2 + $0x20] sm:$0xff] %v181
    %190 = vst [vmem:[#allocation2 + $0x28] sm:$0xff] %v182
    %191 = vst [vmem:[#allocation2 + $0x30] sm:$0xff] %v183
    %192 = vst [vmem:[#allocation2 + $0x38] sm:$0xff] %v184
    %v193 = vld [vmem:[#allocation2] sm:$0xff]
    %vm194 = vcmask 162816
    %v196 = vsel %vm194, 0.0, 0
    %vm198 = vcmask 1043456
    %v200 = vsel %vm198, %v66, 0
    %202 = vmatprep.subr.mxu0 0.0
    %203 = vmatpush1.msra.mxu0 0.0
    %204 = vmatprep.subr.mxu0 0.0
    %205 = vmatpush1.msra.mxu0 0.0
    %206 = vmatprep.subr.mxu0 0.0
    %207 = vmatpush1.msra.mxu0 0.0
    %208 = vmatprep.subr.mxu0 0.0
    %209 = vmatpush1.msra.mxu0 0.0
    %210 = vmatprep.subr.mxu0 0.0
    %211 = vmatpush1.msra.mxu0 0.0
    %212 = vmatprep.subr.mxu0 0.0
    %213 = vmatpush1.msra.mxu0 0.0
    %214 = vmatprep.subr.mxu0 0.0
    %215 = vmatpush1.msra.mxu0 0.0
    %216 = vmatprep.subr.mxu0 0.0
    %217 = vmatpush1.msra.mxu0 0.0
    %218 = vmatprep.subr.mxu0 0.0
    %219 = vmatpush1.msra.mxu0 0.0
    %220 = vmatprep.subr.mxu0 0.0
    %221 = vmatpush1.msra.mxu0 0.0
    %222 = vmatprep.subr.mxu0 0.0
    %223 = vmatpush1.msra.mxu0 0.0
    %224 = vmatprep.subr.mxu0 0.0
    %225 = vmatpush1.msra.mxu0 0.0
    %226 = vmatprep.subr.mxu0 0.0
    %227 = vmatpush1.msra.mxu0 0.0
    %228 = vmatprep.subr.mxu0 0.0
    %229 = vmatpush1.msra.mxu0 %v200
    %230 = vmatprep.subr.mxu0 0.0
    %231 = vmatpush1.msra.mxu0 %v65
    %232 = vmatprep.subr.mxu0 0.0
    %233 = vmatpush1.msra.mxu0 %v64
    %234 = vmatprep.subr.mxu0 0.0
    %235 = vmatpush2.msra.mxu0 0.0
    %236 = vmatprep.subr.mxu0 0.0
    %237 = vmatpush2.msra.mxu0 0.0
    %238 = vmatprep.subr.mxu0 0.0
    %239 = vmatpush2.msra.mxu0 0.0
    %240 = vmatprep.subr.mxu0 0.0
    %241 = vmatpush2.msra.mxu0 0.0
    %242 = vmatprep.subr.mxu0 0.0
    %243 = vmatpush2.msra.mxu0 0.0
    %244 = vmatprep.subr.mxu0 0.0
    %245 = vmatpush2.msra.mxu0 0.0
    %246 = vmatprep.subr.mxu0 0.0
    %247 = vmatpush2.msra.mxu0 0.0
    %248 = vmatprep.subr.mxu0 0.0
    %249 = vmatpush2.msra.mxu0 0.0
    %250 = vmatprep.subr.mxu0 0.0
    %251 = vmatpush2.msra.mxu0 0.0
    %252 = vmatprep.subr.mxu0 0.0
    %253 = vmatpush2.msra.mxu0 0.0
    %254 = vmatprep.subr.mxu0 0.0
    %255 = vmatpush2.msra.mxu0 0.0
    %256 = vmatprep.subr.mxu0 0.0
    %257 = vmatpush2.msra.mxu0 0.0
    %258 = vmatprep.subr.mxu0 0.0
    %259 = vmatpush2.msra.mxu0 0.0
    %260 = vmatprep.subr.mxu0 0.0
    %261 = vmatpush2.msra.mxu0 0.0
    %262 = vmatprep.subr.mxu0 0.0
    %263 = vmatpush2.msra.mxu0 0.0
    %264 = vmatprep.subr.mxu0 0.0
    %265 = vmatpush2.msra.mxu0 0.0
    %266 = vmatprep.mubr.f32.mxu0 0.0
    %267 = vmatmul.mubr.f32.gmra.mxu0 %v196
    %v268 = vpop.f32.mrf.mxu0
    %v269 = vadd.f32 0.0, %v268
    %v270 = vpop.f32.mrf.mxu0
    %271 = vdwg.mxu0
    %v272 = vadd.f32 %v193, %v269
    %v273 = vxor.u32 %v272, 2147483648
    %v274 = vmul.f32 %v273, 1.442695
    %v275 = vpow.pop %v274
    %v276 = vadd.f32 %v275, 1.0
    %v277 = vrcp.pop %v276
    %v278 = vmul.f32 1.0, %v277
    %v279 = vtanh.pop %v272
    %v280 = vmul.f32 %v278, 0.0
    %282 = vrot.lane.b32.xlu0 %v279, 88
    %v283 = vpop.permute.xlu0 %282
    %v285 = vmul.f32 %v278, %v283
    %287 = vrot.lane.b32.xlu0 %v285, 20
    %v288 = vpop.permute.xlu0 %287
    %v290 = vadd.f32 %v280, %v288
    %v291 = vtanh.pop %v290
    %293 = vrot.lane.b32.xlu0 %v291, 40
    %v294 = vpop.permute.xlu0 %293
    %v296 = vmul.f32 %v278, %v294
    %s297 = scalar_lea.vmem [#allocation2], 8
    %v298 = vld [vmem:[%s297] sm:$0xff]
    %300 = vrot.lane.b32.xlu0 %v296, 68
    %v301 = vpop.permute.xlu0 %300
    %v302 = vsel %vm194, %v301, 0
    %304 = vmatprep.subr.mxu0 0.0
    %305 = vmatpush1.msra.mxu0 0.0
    %306 = vmatprep.subr.mxu0 0.0
    %307 = vmatpush1.msra.mxu0 0.0
    %308 = vmatprep.subr.mxu0 0.0
    %309 = vmatpush1.msra.mxu0 0.0
    %310 = vmatprep.subr.mxu0 0.0
    %311 = vmatpush1.msra.mxu0 0.0
    %312 = vmatprep.subr.mxu0 0.0
    %313 = vmatpush1.msra.mxu0 0.0
    %314 = vmatprep.subr.mxu0 0.0
    %315 = vmatpush1.msra.mxu0 0.0
    %316 = vmatprep.subr.mxu0 0.0
    %317 = vmatpush1.msra.mxu0 0.0
    %318 = vmatprep.subr.mxu0 0.0
    %319 = vmatpush1.msra.mxu0 0.0
    %320 = vmatprep.subr.mxu0 0.0
    %321 = vmatpush1.msra.mxu0 0.0
    %322 = vmatprep.subr.mxu0 0.0
    %323 = vmatpush1.msra.mxu0 0.0
    %324 = vmatprep.subr.mxu0 0.0
    %325 = vmatpush1.msra.mxu0 0.0
    %326 = vmatprep.subr.mxu0 0.0
    %327 = vmatpush1.msra.mxu0 0.0
    %328 = vmatprep.subr.mxu0 0.0
    %329 = vmatpush1.msra.mxu0 0.0
    %330 = vmatprep.subr.mxu0 0.0
    %331 = vmatpush1.msra.mxu0 %v200
    %332 = vmatprep.subr.mxu0 0.0
    %333 = vmatpush1.msra.mxu0 %v65
    %334 = vmatprep.subr.mxu0 0.0
    %335 = vmatpush1.msra.mxu0 %v64
    %336 = vmatprep.subr.mxu0 0.0
    %337 = vmatpush2.msra.mxu0 0.0
    %338 = vmatprep.subr.mxu0 0.0
    %339 = vmatpush2.msra.mxu0 0.0
    %340 = vmatprep.subr.mxu0 0.0
    %341 = vmatpush2.msra.mxu0 0.0
    %342 = vmatprep.subr.mxu0 0.0
    %343 = vmatpush2.msra.mxu0 0.0
    %344 = vmatprep.subr.mxu0 0.0
    %345 = vmatpush2.msra.mxu0 0.0
    %346 = vmatprep.subr.mxu0 0.0
    %347 = vmatpush2.msra.mxu0 0.0
    %348 = vmatprep.subr.mxu0 0.0
    %349 = vmatpush2.msra.mxu0 0.0
    %350 = vmatprep.subr.mxu0 0.0
    %351 = vmatpush2.msra.mxu0 0.0
    %352 = vmatprep.subr.mxu0 0.0
    %353 = vmatpush2.msra.mxu0 0.0
    %354 = vmatprep.subr.mxu0 0.0
    %355 = vmatpush2.msra.mxu0 0.0
    %356 = vmatprep.subr.mxu0 0.0
    %357 = vmatpush2.msra.mxu0 0.0
    %358 = vmatprep.subr.mxu0 0.0
    %359 = vmatpush2.msra.mxu0 0.0
    %360 = vmatprep.subr.mxu0 0.0
    %361 = vmatpush2.msra.mxu0 0.0
    %362 = vmatprep.subr.mxu0 0.0
    %363 = vmatpush2.msra.mxu0 0.0
    %364 = vmatprep.subr.mxu0 0.0
    %365 = vmatpush2.msra.mxu0 0.0
    %366 = vmatprep.subr.mxu0 0.0
    %367 = vmatpush2.msra.mxu0 0.0
    %368 = vmatprep.mubr.f32.mxu0 0.0
    %369 = vmatmul.mubr.f32.gmra.mxu0 %v302
    %v370 = vpop.f32.mrf.mxu0
    %v371 = vadd.f32 0.0, %v370
    %v372 = vpop.f32.mrf.mxu0
    %373 = vdwg.mxu0
    %v374 = vadd.f32 %v298, %v371
    %v375 = vxor.u32 %v374, 2147483648
    %v376 = vmul.f32 %v375, 1.442695
    %v377 = vpow.pop %v376
    %v378 = vadd.f32 %v377, 1.0
    %v379 = vrcp.pop %v378
    %v380 = vmul.f32 1.0, %v379
    %v381 = vtanh.pop %v374
    %v382 = vmul.f32 %v380, %v290
    %384 = vrot.lane.b32.xlu0 %v381, 88
    %v385 = vpop.permute.xlu0 %384
    %v387 = vmul.f32 %v380, %v385
    %389 = vrot.lane.b32.xlu0 %v387, 20
    %v390 = vpop.permute.xlu0 %389
    %v392 = vadd.f32 %v382, %v390
    %v393 = vtanh.pop %v392
    %395 = vrot.lane.b32.xlu0 %v393, 40
    %v396 = vpop.permute.xlu0 %395
    %v398 = vmul.f32 %v380, %v396
    %s399 = scalar_lea.vmem [#allocation2], 16
    %v400 = vld [vmem:[%s399] sm:$0xff]
    %402 = vrot.lane.b32.xlu0 %v398, 68
    %v403 = vpop.permute.xlu0 %402
    %v404 = vsel %vm194, %v403, 0
    %406 = vmatprep.subr.mxu0 0.0
    %407 = vmatpush1.msra.mxu0 0.0
    %408 = vmatprep.subr.mxu0 0.0
    %409 = vmatpush1.msra.mxu0 0.0
    %410 = vmatprep.subr.mxu0 0.0
    %411 = vmatpush1.msra.mxu0 0.0
    %412 = vmatprep.subr.mxu0 0.0
    %413 = vmatpush1.msra.mxu0 0.0
    %414 = vmatprep.subr.mxu0 0.0
    %415 = vmatpush1.msra.mxu0 0.0
    %416 = vmatprep.subr.mxu0 0.0
    %417 = vmatpush1.msra.mxu0 0.0
    %418 = vmatprep.subr.mxu0 0.0
    %419 = vmatpush1.msra.mxu0 0.0
    %420 = vmatprep.subr.mxu0 0.0
    %421 = vmatpush1.msra.mxu0 0.0
    %422 = vmatprep.subr.mxu0 0.0
    %423 = vmatpush1.msra.mxu0 0.0
    %424 = vmatprep.subr.mxu0 0.0
    %425 = vmatpush1.msra.mxu0 0.0
    %426 = vmatprep.subr.mxu0 0.0
    %427 = vmatpush1.msra.mxu0 0.0
    %428 = vmatprep.subr.mxu0 0.0
    %429 = vmatpush1.msra.mxu0 0.0
    %430 = vmatprep.subr.mxu0 0.0
    %431 = vmatpush1.msra.mxu0 0.0
    %432 = vmatprep.subr.mxu0 0.0
    %433 = vmatpush1.msra.mxu0 %v200
    %434 = vmatprep.subr.mxu0 0.0
    %435 = vmatpush1.msra.mxu0 %v65
    %436 = vmatprep.subr.mxu0 0.0
    %437 = vmatpush1.msra.mxu0 %v64
    %438 = vmatprep.subr.mxu0 0.0
    %439 = vmatpush2.msra.mxu0 0.0
    %440 = vmatprep.subr.mxu0 0.0
    %441 = vmatpush2.msra.mxu0 0.0
    %442 = vmatprep.subr.mxu0 0.0
    %443 = vmatpush2.msra.mxu0 0.0
    %444 = vmatprep.subr.mxu0 0.0
    %445 = vmatpush2.msra.mxu0 0.0
    %446 = vmatprep.subr.mxu0 0.0
    %447 = vmatpush2.msra.mxu0 0.0
    %448 = vmatprep.subr.mxu0 0.0
    %449 = vmatpush2.msra.mxu0 0.0
    %450 = vmatprep.subr.mxu0 0.0
    %451 = vmatpush2.msra.mxu0 0.0
    %452 = vmatprep.subr.mxu0 0.0
    %453 = vmatpush2.msra.mxu0 0.0
    %454 = vmatprep.subr.mxu0 0.0
    %455 = vmatpush2.msra.mxu0 0.0
    %456 = vmatprep.subr.mxu0 0.0
    %457 = vmatpush2.msra.mxu0 0.0
    %458 = vmatprep.subr.mxu0 0.0
    %459 = vmatpush2.msra.mxu0 0.0
    %460 = vmatprep.subr.mxu0 0.0
    %461 = vmatpush2.msra.mxu0 0.0
    %462 = vmatprep.subr.mxu0 0.0
    %463 = vmatpush2.msra.mxu0 0.0
    %464 = vmatprep.subr.mxu0 0.0
    %465 = vmatpush2.msra.mxu0 0.0
    %466 = vmatprep.subr.mxu0 0.0
    %467 = vmatpush2.msra.mxu0 0.0
    %468 = vmatprep.subr.mxu0 0.0
    %469 = vmatpush2.msra.mxu0 0.0
    %470 = vmatprep.mubr.f32.mxu0 0.0
    %471 = vmatmul.mubr.f32.gmra.mxu0 %v404
    %v472 = vpop.f32.mrf.mxu0
    %v473 = vadd.f32 0.0, %v472
    %v474 = vpop.f32.mrf.mxu0
    %475 = vdwg.mxu0
    %v476 = vadd.f32 %v400, %v473
    %v477 = vxor.u32 %v476, 2147483648
    %v478 = vmul.f32 %v477, 1.442695
    %v479 = vpow.pop %v478
    %v480 = vadd.f32 %v479, 1.0
    %v481 = vrcp.pop %v480
    %v482 = vmul.f32 1.0, %v481
    %v483 = vtanh.pop %v476
    %v484 = vmul.f32 %v482, %v392
    %486 = vrot.lane.b32.xlu0 %v483, 88
    %v487 = vpop.permute.xlu0 %486
    %v489 = vmul.f32 %v482, %v487
    %491 = vrot.lane.b32.xlu0 %v489, 20
    %v492 = vpop.permute.xlu0 %491
    %v494 = vadd.f32 %v484, %v492
    %v495 = vtanh.pop %v494
    %497 = vrot.lane.b32.xlu0 %v495, 40
    %v498 = vpop.permute.xlu0 %497
    %v500 = vmul.f32 %v482, %v498
    %s501 = scalar_lea.vmem [#allocation2], 24
    %v502 = vld [vmem:[%s501] sm:$0xff]
    %504 = vrot.lane.b32.xlu0 %v500, 68
    %v505 = vpop.permute.xlu0 %504
    %v506 = vsel %vm194, %v505, 0
    %508 = vmatprep.subr.mxu0 0.0
    %509 = vmatpush1.msra.mxu0 0.0
    %510 = vmatprep.subr.mxu0 0.0
    %511 = vmatpush1.msra.mxu0 0.0
    %512 = vmatprep.subr.mxu0 0.0
    %513 = vmatpush1.msra.mxu0 0.0
    %514 = vmatprep.subr.mxu0 0.0
    %515 = vmatpush1.msra.mxu0 0.0
    %516 = vmatprep.subr.mxu0 0.0
    %517 = vmatpush1.msra.mxu0 0.0
    %518 = vmatprep.subr.mxu0 0.0
    %519 = vmatpush1.msra.mxu0 0.0
    %520 = vmatprep.subr.mxu0 0.0
    %521 = vmatpush1.msra.mxu0 0.0
    %522 = vmatprep.subr.mxu0 0.0
    %523 = vmatpush1.msra.mxu0 0.0
    %524 = vmatprep.subr.mxu0 0.0
    %525 = vmatpush1.msra.mxu0 0.0
    %526 = vmatprep.subr.mxu0 0.0
    %527 = vmatpush1.msra.mxu0 0.0
    %528 = vmatprep.subr.mxu0 0.0
    %529 = vmatpush1.msra.mxu0 0.0
    %530 = vmatprep.subr.mxu0 0.0
    %531 = vmatpush1.msra.mxu0 0.0
    %532 = vmatprep.subr.mxu0 0.0
    %533 = vmatpush1.msra.mxu0 0.0
    %534 = vmatprep.subr.mxu0 0.0
    %535 = vmatpush1.msra.mxu0 %v200
    %536 = vmatprep.subr.mxu0 0.0
    %537 = vmatpush1.msra.mxu0 %v65
    %538 = vmatprep.subr.mxu0 0.0
    %539 = vmatpush1.msra.mxu0 %v64
    %540 = vmatprep.subr.mxu0 0.0
    %541 = vmatpush2.msra.mxu0 0.0
    %542 = vmatprep.subr.mxu0 0.0
    %543 = vmatpush2.msra.mxu0 0.0
    %544 = vmatprep.subr.mxu0 0.0
    %545 = vmatpush2.msra.mxu0 0.0
    %546 = vmatprep.subr.mxu0 0.0
    %547 = vmatpush2.msra.mxu0 0.0
    %548 = vmatprep.subr.mxu0 0.0
    %549 = vmatpush2.msra.mxu0 0.0
    %550 = vmatprep.subr.mxu0 0.0
    %551 = vmatpush2.msra.mxu0 0.0
    %552 = vmatprep.subr.mxu0 0.0
    %553 = vmatpush2.msra.mxu0 0.0
    %554 = vmatprep.subr.mxu0 0.0
    %555 = vmatpush2.msra.mxu0 0.0
    %556 = vmatprep.subr.mxu0 0.0
    %557 = vmatpush2.msra.mxu0 0.0
    %558 = vmatprep.subr.mxu0 0.0
    %559 = vmatpush2.msra.mxu0 0.0
    %560 = vmatprep.subr.mxu0 0.0
    %561 = vmatpush2.msra.mxu0 0.0
    %562 = vmatprep.subr.mxu0 0.0
    %563 = vmatpush2.msra.mxu0 0.0
    %564 = vmatprep.subr.mxu0 0.0
    %565 = vmatpush2.msra.mxu0 0.0
    %566 = vmatprep.subr.mxu0 0.0
    %567 = vmatpush2.msra.mxu0 0.0
    %568 = vmatprep.subr.mxu0 0.0
    %569 = vmatpush2.msra.mxu0 0.0
    %570 = vmatprep.subr.mxu0 0.0
    %571 = vmatpush2.msra.mxu0 0.0
    %572 = vmatprep.mubr.f32.mxu0 0.0
    %573 = vmatmul.mubr.f32.gmra.mxu0 %v506
    %v574 = vpop.f32.mrf.mxu0
    %v575 = vadd.f32 0.0, %v574
    %v576 = vpop.f32.mrf.mxu0
    %577 = vdwg.mxu0
    %v578 = vadd.f32 %v502, %v575
    %v579 = vxor.u32 %v578, 2147483648
    %v580 = vmul.f32 %v579, 1.442695
    %v581 = vpow.pop %v580
    %v582 = vadd.f32 %v581, 1.0
    %v583 = vrcp.pop %v582
    %v584 = vmul.f32 1.0, %v583
    %v585 = vtanh.pop %v578
    %v586 = vmul.f32 %v584, %v494
    %588 = vrot.lane.b32.xlu0 %v585, 88
    %v589 = vpop.permute.xlu0 %588
    %v591 = vmul.f32 %v584, %v589
    %593 = vrot.lane.b32.xlu0 %v591, 20
    %v594 = vpop.permute.xlu0 %593
    %v596 = vadd.f32 %v586, %v594
    %v597 = vtanh.pop %v596
    %599 = vrot.lane.b32.xlu0 %v597, 40
    %v600 = vpop.permute.xlu0 %599
    %v602 = vmul.f32 %v584, %v600
    %s603 = scalar_lea.vmem [#allocation2], 32
    %v604 = vld [vmem:[%s603] sm:$0xff]
    %606 = vrot.lane.b32.xlu0 %v602, 68
    %v607 = vpop.permute.xlu0 %606
    %v608 = vsel %vm194, %v607, 0
    %610 = vmatprep.subr.mxu0 0.0
    %611 = vmatpush1.msra.mxu0 0.0
    %612 = vmatprep.subr.mxu0 0.0
    %613 = vmatpush1.msra.mxu0 0.0
    %614 = vmatprep.subr.mxu0 0.0
    %615 = vmatpush1.msra.mxu0 0.0
    %616 = vmatprep.subr.mxu0 0.0
    %617 = vmatpush1.msra.mxu0 0.0
    %618 = vmatprep.subr.mxu0 0.0
    %619 = vmatpush1.msra.mxu0 0.0
    %620 = vmatprep.subr.mxu0 0.0
    %621 = vmatpush1.msra.mxu0 0.0
    %622 = vmatprep.subr.mxu0 0.0
    %623 = vmatpush1.msra.mxu0 0.0
    %624 = vmatprep.subr.mxu0 0.0
    %625 = vmatpush1.msra.mxu0 0.0
    %626 = vmatprep.subr.mxu0 0.0
    %627 = vmatpush1.msra.mxu0 0.0
    %628 = vmatprep.subr.mxu0 0.0
    %629 = vmatpush1.msra.mxu0 0.0
    %630 = vmatprep.subr.mxu0 0.0
    %631 = vmatpush1.msra.mxu0 0.0
    %632 = vmatprep.subr.mxu0 0.0
    %633 = vmatpush1.msra.mxu0 0.0
    %634 = vmatprep.subr.mxu0 0.0
    %635 = vmatpush1.msra.mxu0 0.0
    %636 = vmatprep.subr.mxu0 0.0
    %637 = vmatpush1.msra.mxu0 %v200
    %638 = vmatprep.subr.mxu0 0.0
    %639 = vmatpush1.msra.mxu0 %v65
    %640 = vmatprep.subr.mxu0 0.0
    %641 = vmatpush1.msra.mxu0 %v64
    %642 = vmatprep.subr.mxu0 0.0
    %643 = vmatpush2.msra.mxu0 0.0
    %644 = vmatprep.subr.mxu0 0.0
    %645 = vmatpush2.msra.mxu0 0.0
    %646 = vmatprep.subr.mxu0 0.0
    %647 = vmatpush2.msra.mxu0 0.0
    %648 = vmatprep.subr.mxu0 0.0
    %649 = vmatpush2.msra.mxu0 0.0
    %650 = vmatprep.subr.mxu0 0.0
    %651 = vmatpush2.msra.mxu0 0.0
    %652 = vmatprep.subr.mxu0 0.0
    %653 = vmatpush2.msra.mxu0 0.0
    %654 = vmatprep.subr.mxu0 0.0
    %655 = vmatpush2.msra.mxu0 0.0
    %656 = vmatprep.subr.mxu0 0.0
    %657 = vmatpush2.msra.mxu0 0.0
    %658 = vmatprep.subr.mxu0 0.0
    %659 = vmatpush2.msra.mxu0 0.0
    %660 = vmatprep.subr.mxu0 0.0
    %661 = vmatpush2.msra.mxu0 0.0
    %662 = vmatprep.subr.mxu0 0.0
    %663 = vmatpush2.msra.mxu0 0.0
    %664 = vmatprep.subr.mxu0 0.0
    %665 = vmatpush2.msra.mxu0 0.0
    %666 = vmatprep.subr.mxu0 0.0
    %667 = vmatpush2.msra.mxu0 0.0
    %668 = vmatprep.subr.mxu0 0.0
    %669 = vmatpush2.msra.mxu0 0.0
    %670 = vmatprep.subr.mxu0 0.0
    %671 = vmatpush2.msra.mxu0 0.0
    %672 = vmatprep.subr.mxu0 0.0
    %673 = vmatpush2.msra.mxu0 0.0
    %674 = vmatprep.mubr.f32.mxu0 0.0
    %675 = vmatmul.mubr.f32.gmra.mxu0 %v608
    %v676 = vpop.f32.mrf.mxu0
    %v677 = vadd.f32 0.0, %v676
    %v678 = vpop.f32.mrf.mxu0
    %679 = vdwg.mxu0
    %v680 = vadd.f32 %v604, %v677
    %v681 = vxor.u32 %v680, 2147483648
    %v682 = vmul.f32 %v681, 1.442695
    %v683 = vpow.pop %v682
    %v684 = vadd.f32 %v683, 1.0
    %v685 = vrcp.pop %v684
    %v686 = vmul.f32 1.0, %v685
    %v687 = vtanh.pop %v680
    %v688 = vmul.f32 %v686, %v596
    %690 = vrot.lane.b32.xlu0 %v687, 88
    %v691 = vpop.permute.xlu0 %690
    %v693 = vmul.f32 %v686, %v691
    %695 = vrot.lane.b32.xlu0 %v693, 20
    %v696 = vpop.permute.xlu0 %695
    %v698 = vadd.f32 %v688, %v696
    %v699 = vtanh.pop %v698
    %701 = vrot.lane.b32.xlu0 %v699, 40
    %v702 = vpop.permute.xlu0 %701
    %v704 = vmul.f32 %v686, %v702
    %s705 = scalar_lea.vmem [#allocation2], 40
    %v706 = vld [vmem:[%s705] sm:$0xff]
    %708 = vrot.lane.b32.xlu0 %v704, 68
    %v709 = vpop.permute.xlu0 %708
    %v710 = vsel %vm194, %v709, 0
    %712 = vmatprep.subr.mxu0 0.0
    %713 = vmatpush1.msra.mxu0 0.0
    %714 = vmatprep.subr.mxu0 0.0
    %715 = vmatpush1.msra.mxu0 0.0
    %716 = vmatprep.subr.mxu0 0.0
    %717 = vmatpush1.msra.mxu0 0.0
    %718 = vmatprep.subr.mxu0 0.0
    %719 = vmatpush1.msra.mxu0 0.0
    %720 = vmatprep.subr.mxu0 0.0
    %721 = vmatpush1.msra.mxu0 0.0
    %722 = vmatprep.subr.mxu0 0.0
    %723 = vmatpush1.msra.mxu0 0.0
    %724 = vmatprep.subr.mxu0 0.0
    %725 = vmatpush1.msra.mxu0 0.0
    %726 = vmatprep.subr.mxu0 0.0
    %727 = vmatpush1.msra.mxu0 0.0
    %728 = vmatprep.subr.mxu0 0.0
    %729 = vmatpush1.msra.mxu0 0.0
    %730 = vmatprep.subr.mxu0 0.0
    %731 = vmatpush1.msra.mxu0 0.0
    %732 = vmatprep.subr.mxu0 0.0
    %733 = vmatpush1.msra.mxu0 0.0
    %734 = vmatprep.subr.mxu0 0.0
    %735 = vmatpush1.msra.mxu0 0.0
    %736 = vmatprep.subr.mxu0 0.0
    %737 = vmatpush1.msra.mxu0 0.0
    %738 = vmatprep.subr.mxu0 0.0
    %739 = vmatpush1.msra.mxu0 %v200
    %740 = vmatprep.subr.mxu0 0.0
    %741 = vmatpush1.msra.mxu0 %v65
    %742 = vmatprep.subr.mxu0 0.0
    %743 = vmatpush1.msra.mxu0 %v64
    %744 = vmatprep.subr.mxu0 0.0
    %745 = vmatpush2.msra.mxu0 0.0
    %746 = vmatprep.subr.mxu0 0.0
    %747 = vmatpush2.msra.mxu0 0.0
    %748 = vmatprep.subr.mxu0 0.0
    %749 = vmatpush2.msra.mxu0 0.0
    %750 = vmatprep.subr.mxu0 0.0
    %751 = vmatpush2.msra.mxu0 0.0
    %752 = vmatprep.subr.mxu0 0.0
    %753 = vmatpush2.msra.mxu0 0.0
    %754 = vmatprep.subr.mxu0 0.0
    %755 = vmatpush2.msra.mxu0 0.0
    %756 = vmatprep.subr.mxu0 0.0
    %757 = vmatpush2.msra.mxu0 0.0
    %758 = vmatprep.subr.mxu0 0.0
    %759 = vmatpush2.msra.mxu0 0.0
    %760 = vmatprep.subr.mxu0 0.0
    %761 = vmatpush2.msra.mxu0 0.0
    %762 = vmatprep.subr.mxu0 0.0
    %763 = vmatpush2.msra.mxu0 0.0
    %764 = vmatprep.subr.mxu0 0.0
    %765 = vmatpush2.msra.mxu0 0.0
    %766 = vmatprep.subr.mxu0 0.0
    %767 = vmatpush2.msra.mxu0 0.0
    %768 = vmatprep.subr.mxu0 0.0
    %769 = vmatpush2.msra.mxu0 0.0
    %770 = vmatprep.subr.mxu0 0.0
    %771 = vmatpush2.msra.mxu0 0.0
    %772 = vmatprep.subr.mxu0 0.0
    %773 = vmatpush2.msra.mxu0 0.0
    %774 = vmatprep.subr.mxu0 0.0
    %775 = vmatpush2.msra.mxu0 0.0
    %776 = vmatprep.mubr.f32.mxu0 0.0
    %777 = vmatmul.mubr.f32.gmra.mxu0 %v710
    %v778 = vpop.f32.mrf.mxu0
    %v779 = vadd.f32 0.0, %v778
    %v780 = vpop.f32.mrf.mxu0
    %781 = vdwg.mxu0
    %v782 = vadd.f32 %v706, %v779
    %v783 = vxor.u32 %v782, 2147483648
    %v784 = vmul.f32 %v783, 1.442695
    %v785 = vpow.pop %v784
    %v786 = vadd.f32 %v785, 1.0
    %v787 = vrcp.pop %v786
    %v788 = vmul.f32 1.0, %v787
    %v789 = vtanh.pop %v782
    %v790 = vmul.f32 %v788, %v698
    %792 = vrot.lane.b32.xlu0 %v789, 88
    %v793 = vpop.permute.xlu0 %792
    %v795 = vmul.f32 %v788, %v793
    %797 = vrot.lane.b32.xlu0 %v795, 20
    %v798 = vpop.permute.xlu0 %797
    %v800 = vadd.f32 %v790, %v798
    %v801 = vtanh.pop %v800
    %803 = vrot.lane.b32.xlu0 %v801, 40
    %v804 = vpop.permute.xlu0 %803
    %v806 = vmul.f32 %v788, %v804
    %s807 = scalar_lea.vmem [#allocation2], 48
    %v808 = vld [vmem:[%s807] sm:$0xff]
    %810 = vrot.lane.b32.xlu0 %v806, 68
    %v811 = vpop.permute.xlu0 %810
    %v812 = vsel %vm194, %v811, 0
    %814 = vmatprep.subr.mxu0 0.0
    %815 = vmatpush1.msra.mxu0 0.0
    %816 = vmatprep.subr.mxu0 0.0
    %817 = vmatpush1.msra.mxu0 0.0
    %818 = vmatprep.subr.mxu0 0.0
    %819 = vmatpush1.msra.mxu0 0.0
    %820 = vmatprep.subr.mxu0 0.0
    %821 = vmatpush1.msra.mxu0 0.0
    %822 = vmatprep.subr.mxu0 0.0
    %823 = vmatpush1.msra.mxu0 0.0
    %824 = vmatprep.subr.mxu0 0.0
    %825 = vmatpush1.msra.mxu0 0.0
    %826 = vmatprep.subr.mxu0 0.0
    %827 = vmatpush1.msra.mxu0 0.0
    %828 = vmatprep.subr.mxu0 0.0
    %829 = vmatpush1.msra.mxu0 0.0
    %830 = vmatprep.subr.mxu0 0.0
    %831 = vmatpush1.msra.mxu0 0.0
    %832 = vmatprep.subr.mxu0 0.0
    %833 = vmatpush1.msra.mxu0 0.0
    %834 = vmatprep.subr.mxu0 0.0
    %835 = vmatpush1.msra.mxu0 0.0
    %836 = vmatprep.subr.mxu0 0.0
    %837 = vmatpush1.msra.mxu0 0.0
    %838 = vmatprep.subr.mxu0 0.0
    %839 = vmatpush1.msra.mxu0 0.0
    %840 = vmatprep.subr.mxu0 0.0
    %841 = vmatpush1.msra.mxu0 %v200
    %842 = vmatprep.subr.mxu0 0.0
    %843 = vmatpush1.msra.mxu0 %v65
    %844 = vmatprep.subr.mxu0 0.0
    %845 = vmatpush1.msra.mxu0 %v64
    %846 = vmatprep.subr.mxu0 0.0
    %847 = vmatpush2.msra.mxu0 0.0
    %848 = vmatprep.subr.mxu0 0.0
    %849 = vmatpush2.msra.mxu0 0.0
    %850 = vmatprep.subr.mxu0 0.0
    %851 = vmatpush2.msra.mxu0 0.0
    %852 = vmatprep.subr.mxu0 0.0
    %853 = vmatpush2.msra.mxu0 0.0
    %854 = vmatprep.subr.mxu0 0.0
    %855 = vmatpush2.msra.mxu0 0.0
    %856 = vmatprep.subr.mxu0 0.0
    %857 = vmatpush2.msra.mxu0 0.0
    %858 = vmatprep.subr.mxu0 0.0
    %859 = vmatpush2.msra.mxu0 0.0
    %860 = vmatprep.subr.mxu0 0.0
    %861 = vmatpush2.msra.mxu0 0.0
    %862 = vmatprep.subr.mxu0 0.0
    %863 = vmatpush2.msra.mxu0 0.0
    %864 = vmatprep.subr.mxu0 0.0
    %865 = vmatpush2.msra.mxu0 0.0
    %866 = vmatprep.subr.mxu0 0.0
    %867 = vmatpush2.msra.mxu0 0.0
    %868 = vmatprep.subr.mxu0 0.0
    %869 = vmatpush2.msra.mxu0 0.0
    %870 = vmatprep.subr.mxu0 0.0
    %871 = vmatpush2.msra.mxu0 0.0
    %872 = vmatprep.subr.mxu0 0.0
    %873 = vmatpush2.msra.mxu0 0.0
    %874 = vmatprep.subr.mxu0 0.0
    %875 = vmatpush2.msra.mxu0 0.0
    %876 = vmatprep.subr.mxu0 0.0
    %877 = vmatpush2.msra.mxu0 0.0
    %878 = vmatprep.mubr.f32.mxu0 0.0
    %879 = vmatmul.mubr.f32.gmra.mxu0 %v812
    %v880 = vpop.f32.mrf.mxu0
    %v881 = vadd.f32 0.0, %v880
    %v882 = vpop.f32.mrf.mxu0
    %883 = vdwg.mxu0
    %v884 = vadd.f32 %v808, %v881
    %v885 = vxor.u32 %v884, 2147483648
    %v886 = vmul.f32 %v885, 1.442695
    %v887 = vpow.pop %v886
    %v888 = vadd.f32 %v887, 1.0
    %v889 = vrcp.pop %v888
    %v890 = vmul.f32 1.0, %v889
    %v891 = vtanh.pop %v884
    %v892 = vmul.f32 %v890, %v800
    %894 = vrot.lane.b32.xlu0 %v891, 88
    %v895 = vpop.permute.xlu0 %894
    %v897 = vmul.f32 %v890, %v895
    %899 = vrot.lane.b32.xlu0 %v897, 20
    %v900 = vpop.permute.xlu0 %899
    %v902 = vadd.f32 %v892, %v900
    %v903 = vtanh.pop %v902
    %905 = vrot.lane.b32.xlu0 %v903, 40
    %v906 = vpop.permute.xlu0 %905
    %v908 = vmul.f32 %v890, %v906
    %s909 = scalar_lea.vmem [#allocation2], 56
    %v910 = vld [vmem:[%s909] sm:$0xff]
    %912 = vrot.lane.b32.xlu0 %v908, 68
    %v913 = vpop.permute.xlu0 %912
    %v914 = vsel %vm194, %v913, 0
    %916 = vmatprep.subr.mxu0 0.0
    %917 = vmatpush1.msra.mxu0 0.0
    %918 = vmatprep.subr.mxu0 0.0
    %919 = vmatpush1.msra.mxu0 0.0
    %920 = vmatprep.subr.mxu0 0.0
    %921 = vmatpush1.msra.mxu0 0.0
    %922 = vmatprep.subr.mxu0 0.0
    %923 = vmatpush1.msra.mxu0 0.0
    %924 = vmatprep.subr.mxu0 0.0
    %925 = vmatpush1.msra.mxu0 0.0
    %926 = vmatprep.subr.mxu0 0.0
    %927 = vmatpush1.msra.mxu0 0.0
    %928 = vmatprep.subr.mxu0 0.0
    %929 = vmatpush1.msra.mxu0 0.0
    %930 = vmatprep.subr.mxu0 0.0
    %931 = vmatpush1.msra.mxu0 0.0
    %932 = vmatprep.subr.mxu0 0.0
    %933 = vmatpush1.msra.mxu0 0.0
    %934 = vmatprep.subr.mxu0 0.0
    %935 = vmatpush1.msra.mxu0 0.0
    %936 = vmatprep.subr.mxu0 0.0
    %937 = vmatpush1.msra.mxu0 0.0
    %938 = vmatprep.subr.mxu0 0.0
    %939 = vmatpush1.msra.mxu0 0.0
    %940 = vmatprep.subr.mxu0 0.0
    %941 = vmatpush1.msra.mxu0 0.0
    %942 = vmatprep.subr.mxu0 0.0
    %943 = vmatpush1.msra.mxu0 %v200
    %944 = vmatprep.subr.mxu0 0.0
    %945 = vmatpush1.msra.mxu0 %v65
    %946 = vmatprep.subr.mxu0 0.0
    %947 = vmatpush1.msra.mxu0 %v64
    %948 = vmatprep.subr.mxu0 0.0
    %949 = vmatpush2.msra.mxu0 0.0
    %950 = vmatprep.subr.mxu0 0.0
    %951 = vmatpush2.msra.mxu0 0.0
    %952 = vmatprep.subr.mxu0 0.0
    %953 = vmatpush2.msra.mxu0 0.0
    %954 = vmatprep.subr.mxu0 0.0
    %955 = vmatpush2.msra.mxu0 0.0
    %956 = vmatprep.subr.mxu0 0.0
    %957 = vmatpush2.msra.mxu0 0.0
    %958 = vmatprep.subr.mxu0 0.0
    %959 = vmatpush2.msra.mxu0 0.0
    %960 = vmatprep.subr.mxu0 0.0
    %961 = vmatpush2.msra.mxu0 0.0
    %962 = vmatprep.subr.mxu0 0.0
    %963 = vmatpush2.msra.mxu0 0.0
    %964 = vmatprep.subr.mxu0 0.0
    %965 = vmatpush2.msra.mxu0 0.0
    %966 = vmatprep.subr.mxu0 0.0
    %967 = vmatpush2.msra.mxu0 0.0
    %968 = vmatprep.subr.mxu0 0.0
    %969 = vmatpush2.msra.mxu0 0.0
    %970 = vmatprep.subr.mxu0 0.0
    %971 = vmatpush2.msra.mxu0 0.0
    %972 = vmatprep.subr.mxu0 0.0
    %973 = vmatpush2.msra.mxu0 0.0
    %974 = vmatprep.subr.mxu0 0.0
    %975 = vmatpush2.msra.mxu0 0.0
    %976 = vmatprep.subr.mxu0 0.0
    %977 = vmatpush2.msra.mxu0 0.0
    %978 = vmatprep.subr.mxu0 0.0
    %979 = vmatpush2.msra.mxu0 0.0
    %980 = vmatprep.mubr.f32.mxu0 0.0
    %981 = vmatmul.mubr.f32.gmra.mxu0 %v914
    %v982 = vpop.f32.mrf.mxu0
    %v983 = vadd.f32 0.0, %v982
    %v984 = vpop.f32.mrf.mxu0
    %985 = vdwg.mxu0
    %v986 = vadd.f32 %v910, %v983
    %v987 = vxor.u32 %v986, 2147483648
    %v988 = vmul.f32 %v987, 1.442695
    %v989 = vpow.pop %v988
    %v990 = vadd.f32 %v989, 1.0
    %v991 = vrcp.pop %v990
    %v992 = vmul.f32 1.0, %v991
    %v993 = vtanh.pop %v986
    %v994 = vmul.f32 %v992, %v902
    %996 = vrot.lane.b32.xlu0 %v993, 88
    %v997 = vpop.permute.xlu0 %996
    %v999 = vmul.f32 %v992, %v997
    %1001 = vrot.lane.b32.xlu0 %v999, 20
    %v1002 = vpop.permute.xlu0 %1001
    %v1004 = vadd.f32 %v994, %v1002
    %v1005 = vtanh.pop %v1004
    %1007 = vrot.lane.b32.xlu0 %v1005, 40
    %v1008 = vpop.permute.xlu0 %1007
    %v1010 = vmul.f32 %v992, %v1008
    %v1011 = vld [vmem:[#allocation8] sm:$0xff]
    %v1012 = vld [vmem:[#allocation8 + $0x8] sm:$0xff]
    %v1013 = vld [vmem:[#allocation8 + $0x10] sm:$0xf]
    %v1014 = vld [vmem:[%s5] sm:$0x1]
    %v1016 = vlaneseq
    %v1017 = vshrl.u32 %v1016, 7
    %v1018 = vsub.s32 0, %v1017
    %v1019 = vrot.slane %v1014, %v1018
    %1022 = vrot.lane.b32.xlu0 %v1010, 68
    %v1023 = vpop.permute.xlu0 %1022
    %v1024 = vsel %vm194, %v1023, 0
    %v1027 = vsel %vm198, %v1013, 0
    %1029 = vmatprep.subr.mxu0 0.0
    %1030 = vmatpush1.msra.mxu0 0.0
    %1031 = vmatprep.subr.mxu0 0.0
    %1032 = vmatpush1.msra.mxu0 0.0
    %1033 = vmatprep.subr.mxu0 0.0
    %1034 = vmatpush1.msra.mxu0 0.0
    %1035 = vmatprep.subr.mxu0 0.0
    %1036 = vmatpush1.msra.mxu0 0.0
    %1037 = vmatprep.subr.mxu0 0.0
    %1038 = vmatpush1.msra.mxu0 0.0
    %1039 = vmatprep.subr.mxu0 0.0
    %1040 = vmatpush1.msra.mxu0 0.0
    %1041 = vmatprep.subr.mxu0 0.0
    %1042 = vmatpush1.msra.mxu0 0.0
    %1043 = vmatprep.subr.mxu0 0.0
    %1044 = vmatpush1.msra.mxu0 0.0
    %1045 = vmatprep.subr.mxu0 0.0
    %1046 = vmatpush1.msra.mxu0 0.0
    %1047 = vmatprep.subr.mxu0 0.0
    %1048 = vmatpush1.msra.mxu0 0.0
    %1049 = vmatprep.subr.mxu0 0.0
    %1050 = vmatpush1.msra.mxu0 0.0
    %1051 = vmatprep.subr.mxu0 0.0
    %1052 = vmatpush1.msra.mxu0 0.0
    %1053 = vmatprep.subr.mxu0 0.0
    %1054 = vmatpush1.msra.mxu0 0.0
    %1055 = vmatprep.subr.mxu0 0.0
    %1056 = vmatpush1.msra.mxu0 %v1027
    %1057 = vmatprep.subr.mxu0 0.0
    %1058 = vmatpush1.msra.mxu0 %v1012
    %1059 = vmatprep.subr.mxu0 0.0
    %1060 = vmatpush1.msra.mxu0 %v1011
    %1061 = vmatprep.subr.mxu0 0.0
    %1062 = vmatpush2.msra.mxu0 0.0
    %1063 = vmatprep.subr.mxu0 0.0
    %1064 = vmatpush2.msra.mxu0 0.0
    %1065 = vmatprep.subr.mxu0 0.0
    %1066 = vmatpush2.msra.mxu0 0.0
    %1067 = vmatprep.subr.mxu0 0.0
    %1068 = vmatpush2.msra.mxu0 0.0
    %1069 = vmatprep.subr.mxu0 0.0
    %1070 = vmatpush2.msra.mxu0 0.0
    %1071 = vmatprep.subr.mxu0 0.0
    %1072 = vmatpush2.msra.mxu0 0.0
    %1073 = vmatprep.subr.mxu0 0.0
    %1074 = vmatpush2.msra.mxu0 0.0
    %1075 = vmatprep.subr.mxu0 0.0
    %1076 = vmatpush2.msra.mxu0 0.0
    %1077 = vmatprep.subr.mxu0 0.0
    %1078 = vmatpush2.msra.mxu0 0.0
    %1079 = vmatprep.subr.mxu0 0.0
    %1080 = vmatpush2.msra.mxu0 0.0
    %1081 = vmatprep.subr.mxu0 0.0
    %1082 = vmatpush2.msra.mxu0 0.0
    %1083 = vmatprep.subr.mxu0 0.0
    %1084 = vmatpush2.msra.mxu0 0.0
    %1085 = vmatprep.subr.mxu0 0.0
    %1086 = vmatpush2.msra.mxu0 0.0
    %1087 = vmatprep.subr.mxu0 0.0
    %1088 = vmatpush2.msra.mxu0 0.0
    %1089 = vmatprep.subr.mxu0 0.0
    %1090 = vmatpush2.msra.mxu0 0.0
    %1091 = vmatprep.subr.mxu0 0.0
    %1092 = vmatpush2.msra.mxu0 0.0
    %1093 = vmatprep.mubr.f32.mxu0 0.0
    %1094 = vmatmul.mubr.f32.gmra.mxu0 %v1024
    %v1095 = vpop.f32.mrf.mxu0
    %v1096 = vadd.f32 %v1019, %v1095
    %v1097 = vpop.f32.mrf.mxu0
    %1098 = vdwg.mxu0
    %1099 = vst [vmem:[#allocation9] sm:$0xff] %v1096
    // Predicated region
    $region38: #{tpu_custom_call.1} parent=1 // pred_check
      _
    $region39: #{tpu_custom_call.1} parent=1 // pred_check_branch
      %1101 = sbr.rel (0) target = $region41
    $region40: #{tpu_custom_call.1} parent=1 // pred_region
      %s1103 = ssub.s32 128, 128
      %1104 = vsyncadd [#allocation5], %s1103
      %s1106 = sshll.u32 [#allocation9], 4
      %s1107 = int_to_ptr.vmem [resolvable:$true] %s1106
      %1109 = dma.vmem_to_hbm [thread:$0]  %s1107, 128, %s6, [#allocation5]
    $region41: #{tpu_custom_call.1} parent=1 // pred_fallthru
      _
    // Predicated region
    $region42: #{tpu_custom_call.1} parent=1 // pred_check
      _
    $region43: #{tpu_custom_call.1} parent=1 // pred_check_branch
      %1111 = sbr.rel (0) target = $region45
    $region44: #{tpu_custom_call.1} parent=1 // pred_region
      %1112 = dma.done [#allocation5], 128
    $region45: #{tpu_custom_call.1} parent=1 // pred_fallthru
      _
    %1113 = vsyncpa [#allocation4], 1
    %1114 = vsyncpa [#allocation7], 1
    %1115 = vsyncpa [#allocation5], 1

</llo_original>
